<compile_context>
chip_gen: v7x
topology: tpu7x:2x2x1
jax: 0.10.0
libtpu: 0.0.40
codegen_flags: <defaults>
</compile_context>

<pallas_src>
import functools

import jax
import jax.numpy as jnp
from jax.experimental import pallas as pl
from jax.experimental.pallas import tpu as pltpu


def _make_kernel(total_graphs, feat_d, n_feat, n_hidden_1, n_hidden_2):
    """Kernel closure over static sizes (graph count, skip offset, widths)."""
    F, H1, H2 = n_feat, n_hidden_1, n_hidden_2

    def kernel(adj_ref, x_ref, idx_ref,
               w1a_ref, w1b_ref, p1_ref,
               w2a_ref, w2b_ref, p2_ref,
               w4x_ref, w4h1_ref, w4h2_ref, b4_ref,
               out_ref, xskip_ref):
        adj = adj_ref[...]            # (R, R) block-diagonal batched adjacency
        x = x_ref[...]                # (R, F)

        # ---- layer 1: relu(fc1([x | adj@x])) -> BN (eval, folded) ----------
        # split contraction: [x | adj@x] @ W1 == x@W1a + (adj@x)@W1b
        ax = jnp.dot(adj, x, preferred_element_type=jnp.float32)
        z1 = (jnp.dot(x, w1a_ref[...], preferred_element_type=jnp.float32)
              + jnp.dot(ax, w1b_ref[...], preferred_element_type=jnp.float32))
        h1 = (jnp.maximum(z1 + p1_ref[0:1, :], 0.0)
              * p1_ref[1:2, :] + p1_ref[2:3, :])                      # (R, H1)

        # ---- layer 2 --------------------------------------------------------
        ah1 = jnp.dot(adj, h1, preferred_element_type=jnp.float32)
        z2 = (jnp.dot(h1, w2a_ref[...], preferred_element_type=jnp.float32)
              + jnp.dot(ah1, w2b_ref[...], preferred_element_type=jnp.float32))
        h2 = (jnp.maximum(z2 + p2_ref[0:1, :], 0.0)
              * p2_ref[1:2, :] + p2_ref[2:3, :])                      # (R, H2)

        # ---- skip output: x_cat[:, feat_d:] written segment-by-segment ------
        col = 0
        for seg, start, width in ((x, 0, F), (h1, F, H1), (h2, F + H1, H2)):
            lo = max(feat_d, start)
            hi = start + width
            if hi > lo:                       # static Python (feat_d is static)
                xskip_ref[:, col:col + (hi - lo)] = seg[:, lo - start:width]
                col += hi - lo

        # ---- fc4 + scatter_add pooling ---------------------------------------
        # fc4 is linear: project each node first (split over segments, so no
        # x_cat concat), then sum-pool all B*G graphs with one one-hot matmul;
        # bias added once after pooling (exactly fc4(scatter_add(x_cat))).
        dims = (((1,), (1,)), ((), ()))
        s_node = (jax.lax.dot_general(w4x_ref[...], x, dims,
                                      preferred_element_type=jnp.float32)
                  + jax.lax.dot_general(w4h1_ref[...], h1, dims,
                                        preferred_element_type=jnp.float32)
                  + jax.lax.dot_general(w4h2_ref[...], h2, dims,
                                        preferred_element_type=jnp.float32))   # (1, R)
        idx = idx_ref[...]                                             # (1, R)
        n_rows = adj.shape[0]
        gids = jax.lax.broadcasted_iota(jnp.int32, (total_graphs, n_rows), 0)
        onehot = (gids == idx).astype(jnp.float32)                     # (TG, R)
        pooled = jax.lax.dot_general(s_node, onehot, dims,
                                     preferred_element_type=jnp.float32)  # (1, TG)
        out_ref[...] = jnp.maximum(pooled + b4_ref[0, 0], 0.0)

    return kernel


def prepare_params(params, eps=1e-5):
    """One-time parameter preparation (BN fold + weight splitting). Reuse."""
    f32 = jnp.float32
    w1 = params["w1"].astype(f32)                     # (2F, H1)
    w2 = params["w2"].astype(f32)                     # (2H1, H2)
    F = w1.shape[0] // 2
    H1 = w1.shape[1]
    H2 = w2.shape[1]
    s1 = params["bn1_gamma"] / jnp.sqrt(params["bn1_var"] + eps)
    t1 = params["bn1_beta"] - params["bn1_mean"] * s1
    s2 = params["bn2_gamma"] / jnp.sqrt(params["bn2_var"] + eps)
    t2 = params["bn2_beta"] - params["bn2_mean"] * s2
    w4 = params["w4"].reshape(-1).astype(f32)         # (F + H1 + H2,)
    return {
        "w1a": w1[:F], "w1b": w1[F:],                                  # (F, H1) x2
        "p1": jnp.stack([params["b1"], s1, t1]).astype(f32),           # (3, H1)
        "w2a": w2[:H1], "w2b": w2[H1:],                                # (H1, H2) x2
        "p2": jnp.stack([params["b2"], s2, t2]).astype(f32),           # (3, H2)
        "w4x": w4[:F].reshape(1, F),
        "w4h1": w4[F:F + H1].reshape(1, H1),
        "w4h2": w4[F + H1:].reshape(1, H2),
        "b4": params["b4"].reshape(1, 1).astype(f32),                  # SMEM scalar
    }


@functools.partial(jax.jit, static_argnames=("num_graphs", "feat_d"))
def gnn_skip_small_forward_batched(adj, x_in, idx, prepped, *, num_graphs, feat_d):
    """Batched forward: adj (B,N,N), x_in (B,N,F), idx (B,N) int.

    Returns (pooled_logits (B, num_graphs), skip_feats (B, N, D - feat_d)).
    """
    B, N, F = x_in.shape
    H1 = prepped["w1a"].shape[1]
    H2 = prepped["w2a"].shape[1]
    D = F + H1 + H2
    d_skip = D - feat_d
    R = B * N
    TG = B * num_graphs

    # Fold the batch into the matmul row axis: block-diagonal adjacency.
    adj = adj.astype(jnp.float32)
    eye_b = jnp.eye(B, dtype=jnp.float32)
    adj_bd = (eye_b[:, None, :, None] * adj[:, :, None, :]).reshape(R, R)
    x_rows = x_in.astype(jnp.float32).reshape(R, F)
    # Global graph ids so all B*G graphs pool in a single matmul.
    idx_g = (idx.astype(jnp.int32)
             + num_graphs * jnp.arange(B, dtype=jnp.int32)[:, None]).reshape(1, R)

    const2 = lambda i: (0, 0)

    out_shapes = (
        jax.ShapeDtypeStruct((1, TG), jnp.float32),     # pooled logits, lane-dense
        jax.ShapeDtypeStruct((R, d_skip), jnp.float32),  # x_cat[:, feat_d:]
    )

    pooled, x_skip = pl.pallas_call(
        _make_kernel(TG, feat_d, F, H1, H2),
        out_shape=out_shapes,
        grid=(1,),
        in_specs=[
            pl.BlockSpec((R, R), const2),                # adj (block-diagonal)
            pl.BlockSpec((R, F), const2),                # x rows
            pl.BlockSpec((1, R), const2),                # global graph ids
            pl.BlockSpec((F, H1), const2),               # W1a
            pl.BlockSpec((F, H1), const2),               # W1b
            pl.BlockSpec((3, H1), const2),               # [b1; s1; t1]
            pl.BlockSpec((H1, H2), const2),              # W2a
            pl.BlockSpec((H1, H2), const2),              # W2b
            pl.BlockSpec((3, H2), const2),               # [b2; s2; t2]
            pl.BlockSpec((1, F), const2),                # W4 (x segment)
            pl.BlockSpec((1, H1), const2),               # W4 (h1 segment)
            pl.BlockSpec((1, H2), const2),               # W4 (h2 segment)
            pl.BlockSpec(memory_space=pltpu.MemorySpace.SMEM),   # b4 scalar
        ],
        out_specs=[
            pl.BlockSpec((1, TG), const2),
            pl.BlockSpec((R, d_skip), const2),
        ],
        compiler_params=pltpu.CompilerParams(
            dimension_semantics=("arbitrary",)),
    )(adj_bd, x_rows, idx_g,
      prepped["w1a"], prepped["w1b"], prepped["p1"],
      prepped["w2a"], prepped["w2b"], prepped["p2"],
      prepped["w4x"], prepped["w4h1"], prepped["w4h2"], prepped["b4"])

    return pooled.reshape(B, num_graphs), x_skip.reshape(B, N, d_skip)


def gnn_skip_small_forward(adj, x_in, idx, prepped, *, num_graphs, feat_d):
    """Single-instance forward matching the torch module's return shapes."""
    out, x_skip = gnn_skip_small_forward_batched(
        adj[None], x_in[None], idx[None], prepped,
        num_graphs=num_graphs, feat_d=feat_d)
    return out[0].reshape(num_graphs, 1), x_skip[0]


def reference_forward(adj, x_in, idx, params, num_graphs, feat_d, eps=1e-5):
    """Pure-JAX reference of the torch forward (eval-mode BN/dropout)."""
    hp = jax.lax.Precision.HIGHEST
    ax = jnp.dot(adj, x_in, precision=hp)
    h1 = jnp.maximum(
        jnp.dot(jnp.concatenate([x_in, ax], 1), params["w1"], precision=hp)
        + params["b1"], 0.0)
    h1 = (h1 - params["bn1_mean"]) / jnp.sqrt(params["bn1_var"] + eps) \
        * params["bn1_gamma"] + params["bn1_beta"]
    ah1 = jnp.dot(adj, h1, precision=hp)
    h2 = jnp.maximum(
        jnp.dot(jnp.concatenate([h1, ah1], 1), params["w2"], precision=hp)
        + params["b2"], 0.0)
    h2 = (h2 - params["bn2_mean"]) / jnp.sqrt(params["bn2_var"] + eps) \
        * params["bn2_gamma"] + params["bn2_beta"]
    x_cat = jnp.concatenate([x_in, h1, h2], 1)
    h_g = jnp.zeros((num_graphs, x_cat.shape[1]), jnp.float32).at[idx].add(x_cat)
    out = jnp.maximum(jnp.dot(h_g, params["w4"], precision=hp) + params["b4"], 0.0)
    return out, x_cat[:, feat_d:]


if __name__ == "__main__":
    key = jax.random.PRNGKey(0)
    # n_feat=16, n_hidden_1=32, n_hidden_2=32; B independent graph-batches of
    # N=16 nodes each, G=4 graphs per batch; feat_d = n_feat so the skip output
    # is cat(h1, h2). B*N = 128 rows -> one full MXU tile per matmul.
    B, N, F, H1, H2, G = 8, 16, 16, 32, 32, 4
    feat_d = F

    keys = jax.random.split(key, 8)
    adj = (jax.random.uniform(keys[0], (B, N, N)) < 0.3).astype(jnp.float32)
    adj = jnp.maximum(adj, jnp.swapaxes(adj, 1, 2)) + jnp.eye(N, dtype=jnp.float32)
    x_in = jax.random.normal(keys[1], (B, N, F), dtype=jnp.float32)
    idx = jnp.tile(jnp.repeat(jnp.arange(G, dtype=jnp.int32), N // G)[None], (B, 1))

    params = {
        "w1": 0.1 * jax.random.normal(keys[2], (2 * F, H1), jnp.float32),
        "b1": 0.1 * jax.random.normal(keys[3], (H1,), jnp.float32),
        "w2": 0.1 * jax.random.normal(keys[4], (2 * H1, H2), jnp.float32),
        "b2": 0.1 * jax.random.normal(keys[5], (H2,), jnp.float32),
        "w4": 0.1 * jax.random.normal(keys[6], (F + H1 + H2, 1), jnp.float32),
        "b4": 0.1 * jax.random.normal(keys[7], (1,), jnp.float32),
        # fresh BatchNorm1d running stats / affine params (eval mode)
        "bn1_gamma": jnp.ones((H1,), jnp.float32),
        "bn1_beta": jnp.zeros((H1,), jnp.float32),
        "bn1_mean": jnp.zeros((H1,), jnp.float32),
        "bn1_var": jnp.ones((H1,), jnp.float32),
        "bn2_gamma": jnp.ones((H2,), jnp.float32),
        "bn2_beta": jnp.zeros((H2,), jnp.float32),
        "bn2_mean": jnp.zeros((H2,), jnp.float32),
        "bn2_var": jnp.ones((H2,), jnp.float32),
    }
    prepped = prepare_params(params)

    # Batched call (one pallas_call, ONE grid step, for all B graph-batches).
    out_b, xskip_b = gnn_skip_small_forward_batched(
        adj, x_in, idx, prepped, num_graphs=G, feat_d=feat_d)
    jax.block_until_ready((out_b, xskip_b))
    assert out_b.shape == (B, G)
    assert xskip_b.shape == (B, N, F + H1 + H2 - feat_d)

    # Single-instance call with torch-shaped outputs.
    out0, xskip0 = gnn_skip_small_forward(
        adj[0], x_in[0], idx[0], prepped, num_graphs=G, feat_d=feat_d)
    jax.block_until_ready((out0, xskip0))
    assert out0.shape == (G, 1)
    assert xskip0.shape == (N, F + H1 + H2 - feat_d)

    # Correctness vs pure-JAX reference.
    ref_out, ref_skip = jax.vmap(
        lambda a, x, i: reference_forward(a, x, i, params, G, feat_d))(adj, x_in, idx)
    ok_out = jnp.allclose(out_b, ref_out.reshape(B, G), atol=1e-2, rtol=1e-2)
    ok_skip = jnp.allclose(xskip_b, ref_skip, atol=1e-2, rtol=1e-2)
    assert bool(ok_out) and bool(ok_skip), "kernel output mismatch vs reference"

    print("KERNEL_OK")
</pallas_src>

<mosaic_0001>
module attributes {stable_mosaic.version = 11 : i64} {
  func.func @kernel(%arg0: i32, %arg1: memref<128x128xf32, #tpu.memory_space<vmem>>, %arg2: memref<128x16xf32, #tpu.memory_space<vmem>>, %arg3: memref<1x128xi32, #tpu.memory_space<vmem>>, %arg4: memref<16x32xf32, #tpu.memory_space<vmem>>, %arg5: memref<16x32xf32, #tpu.memory_space<vmem>>, %arg6: memref<3x32xf32, #tpu.memory_space<vmem>>, %arg7: memref<32x32xf32, #tpu.memory_space<vmem>>, %arg8: memref<32x32xf32, #tpu.memory_space<vmem>>, %arg9: memref<3x32xf32, #tpu.memory_space<vmem>>, %arg10: memref<1x16xf32, #tpu.memory_space<vmem>>, %arg11: memref<1x32xf32, #tpu.memory_space<vmem>>, %arg12: memref<1x32xf32, #tpu.memory_space<vmem>>, %arg13: memref<1x1xf32, #tpu.memory_space<smem>>, %arg14: memref<1x32xf32, #tpu.memory_space<vmem>>, %arg15: memref<128x64xf32, #tpu.memory_space<vmem>>) attributes {dimension_semantics = [#tpu.dimension_semantics<arbitrary>], iteration_bounds = array<i64: 1>, scalar_prefetch = 0 : i64, scratch_operands = 0 : i64, tpu.core_type = #tpu.core_type<tc>, window_params = [{pipeline_mode = #tpu.pipeline_mode<synchronous>, transform_indices = @transform_0, window_bounds = array<i64: 128, 128>}, {pipeline_mode = #tpu.pipeline_mode<synchronous>, transform_indices = @transform_1, window_bounds = array<i64: 128, 16>}, {pipeline_mode = #tpu.pipeline_mode<synchronous>, transform_indices = @transform_2, window_bounds = array<i64: 1, 128>}, {pipeline_mode = #tpu.pipeline_mode<synchronous>, transform_indices = @transform_3, window_bounds = array<i64: 16, 32>}, {pipeline_mode = #tpu.pipeline_mode<synchronous>, transform_indices = @transform_4, window_bounds = array<i64: 16, 32>}, {pipeline_mode = #tpu.pipeline_mode<synchronous>, transform_indices = @transform_5, window_bounds = array<i64: 3, 32>}, {pipeline_mode = #tpu.pipeline_mode<synchronous>, transform_indices = @transform_6, window_bounds = array<i64: 32, 32>}, {pipeline_mode = #tpu.pipeline_mode<synchronous>, transform_indices = @transform_7, window_bounds = array<i64: 32, 32>}, {pipeline_mode = #tpu.pipeline_mode<synchronous>, transform_indices = @transform_8, window_bounds = array<i64: 3, 32>}, {pipeline_mode = #tpu.pipeline_mode<synchronous>, transform_indices = @transform_9, window_bounds = array<i64: 1, 16>}, {pipeline_mode = #tpu.pipeline_mode<synchronous>, transform_indices = @transform_10, window_bounds = array<i64: 1, 32>}, {pipeline_mode = #tpu.pipeline_mode<synchronous>, transform_indices = @transform_11, window_bounds = array<i64: 1, 32>}, {transform_indices = @transform_12, window_bounds = array<i64: 1, 1>}, {pipeline_mode = #tpu.pipeline_mode<synchronous>, transform_indices = @transform_13, window_bounds = array<i64: 1, 32>}, {pipeline_mode = #tpu.pipeline_mode<synchronous>, transform_indices = @transform_14, window_bounds = array<i64: 128, 64>}]} {
    %c0 = arith.constant 0 : index
    %c0_0 = arith.constant 0 : index
    %0 = vector.load %arg1[%c0, %c0_0] : memref<128x128xf32, #tpu.memory_space<vmem>>, vector<128x128xf32>
    %c0_1 = arith.constant 0 : index
    %c0_2 = arith.constant 0 : index
    %1 = vector.load %arg2[%c0_1, %c0_2] : memref<128x16xf32, #tpu.memory_space<vmem>>, vector<128x16xf32>
    %cst = arith.constant dense<0.000000e+00> : vector<128x16xf32>
    %2 = tpu.matmul %0, %1, %cst {dimension_numbers = #tpu.dot_dimension_numbers<[1], [0], [0], [1], [0, 0, 1, 1], [], []>} : vector<128x128xf32>, vector<128x16xf32>, vector<128x16xf32> -> vector<128x16xf32>
    %c0_3 = arith.constant 0 : index
    %c0_4 = arith.constant 0 : index
    %3 = vector.load %arg4[%c0_3, %c0_4] : memref<16x32xf32, #tpu.memory_space<vmem>>, vector<16x32xf32>
    %cst_5 = arith.constant dense<0.000000e+00> : vector<128x32xf32>
    %4 = tpu.matmul %1, %3, %cst_5 {dimension_numbers = #tpu.dot_dimension_numbers<[1], [0], [0], [1], [0, 0, 1, 1], [], []>} : vector<128x16xf32>, vector<16x32xf32>, vector<128x32xf32> -> vector<128x32xf32>
    %c0_6 = arith.constant 0 : index
    %c0_7 = arith.constant 0 : index
    %5 = vector.load %arg5[%c0_6, %c0_7] : memref<16x32xf32, #tpu.memory_space<vmem>>, vector<16x32xf32>
    %cst_8 = arith.constant dense<0.000000e+00> : vector<128x32xf32>
    %6 = tpu.matmul %2, %5, %cst_8 {dimension_numbers = #tpu.dot_dimension_numbers<[1], [0], [0], [1], [0, 0, 1, 1], [], []>} : vector<128x16xf32>, vector<16x32xf32>, vector<128x32xf32> -> vector<128x32xf32>
    %7 = arith.addf %4, %6 : vector<128x32xf32>
    %c0_9 = arith.constant 0 : index
    %c0_10 = arith.constant 0 : index
    %8 = vector.load %arg6[%c0_9, %c0_10] : memref<3x32xf32, #tpu.memory_space<vmem>>, vector<1x32xf32>
    %9 = vector.broadcast %8 : vector<1x32xf32> to vector<128x32xf32>
    %10 = arith.addf %7, %9 : vector<128x32xf32>
    %cst_11 = arith.constant 0.000000e+00 : f32
    %11 = vector.broadcast %cst_11 : f32 to vector<128x32xf32>
    %12 = arith.maximumf %10, %11 : vector<128x32xf32>
    %c1 = arith.constant 1 : index
    %c0_12 = arith.constant 0 : index
    %13 = vector.load %arg6[%c1, %c0_12] : memref<3x32xf32, #tpu.memory_space<vmem>>, vector<1x32xf32>
    %14 = vector.broadcast %13 : vector<1x32xf32> to vector<128x32xf32>
    %15 = arith.mulf %12, %14 : vector<128x32xf32>
    %c2 = arith.constant 2 : index
    %c0_13 = arith.constant 0 : index
    %16 = vector.load %arg6[%c2, %c0_13] : memref<3x32xf32, #tpu.memory_space<vmem>>, vector<1x32xf32>
    %17 = vector.broadcast %16 : vector<1x32xf32> to vector<128x32xf32>
    %18 = arith.addf %15, %17 : vector<128x32xf32>
    %cst_14 = arith.constant dense<0.000000e+00> : vector<128x32xf32>
    %19 = tpu.matmul %0, %18, %cst_14 {dimension_numbers = #tpu.dot_dimension_numbers<[1], [0], [0], [1], [0, 0, 1, 1], [], []>} : vector<128x128xf32>, vector<128x32xf32>, vector<128x32xf32> -> vector<128x32xf32>
    %c0_15 = arith.constant 0 : index
    %c0_16 = arith.constant 0 : index
    %20 = vector.load %arg7[%c0_15, %c0_16] : memref<32x32xf32, #tpu.memory_space<vmem>>, vector<32x32xf32>
    %cst_17 = arith.constant dense<0.000000e+00> : vector<128x32xf32>
    %21 = tpu.matmul %18, %20, %cst_17 {dimension_numbers = #tpu.dot_dimension_numbers<[1], [0], [0], [1], [0, 0, 1, 1], [], []>} : vector<128x32xf32>, vector<32x32xf32>, vector<128x32xf32> -> vector<128x32xf32>
    %c0_18 = arith.constant 0 : index
    %c0_19 = arith.constant 0 : index
    %22 = vector.load %arg8[%c0_18, %c0_19] : memref<32x32xf32, #tpu.memory_space<vmem>>, vector<32x32xf32>
    %cst_20 = arith.constant dense<0.000000e+00> : vector<128x32xf32>
    %23 = tpu.matmul %19, %22, %cst_20 {dimension_numbers = #tpu.dot_dimension_numbers<[1], [0], [0], [1], [0, 0, 1, 1], [], []>} : vector<128x32xf32>, vector<32x32xf32>, vector<128x32xf32> -> vector<128x32xf32>
    %24 = arith.addf %21, %23 : vector<128x32xf32>
    %c0_21 = arith.constant 0 : index
    %c0_22 = arith.constant 0 : index
    %25 = vector.load %arg9[%c0_21, %c0_22] : memref<3x32xf32, #tpu.memory_space<vmem>>, vector<1x32xf32>
    %26 = vector.broadcast %25 : vector<1x32xf32> to vector<128x32xf32>
    %27 = arith.addf %24, %26 : vector<128x32xf32>
    %cst_23 = arith.constant 0.000000e+00 : f32
    %28 = vector.broadcast %cst_23 : f32 to vector<128x32xf32>
    %29 = arith.maximumf %27, %28 : vector<128x32xf32>
    %c1_24 = arith.constant 1 : index
    %c0_25 = arith.constant 0 : index
    %30 = vector.load %arg9[%c1_24, %c0_25] : memref<3x32xf32, #tpu.memory_space<vmem>>, vector<1x32xf32>
    %31 = vector.broadcast %30 : vector<1x32xf32> to vector<128x32xf32>
    %32 = arith.mulf %29, %31 : vector<128x32xf32>
    %c2_26 = arith.constant 2 : index
    %c0_27 = arith.constant 0 : index
    %33 = vector.load %arg9[%c2_26, %c0_27] : memref<3x32xf32, #tpu.memory_space<vmem>>, vector<1x32xf32>
    %34 = vector.broadcast %33 : vector<1x32xf32> to vector<128x32xf32>
    %35 = arith.addf %32, %34 : vector<128x32xf32>
    %c0_28 = arith.constant 0 : index
    %c0_29 = arith.constant 0 : index
    %36 = vector.load %arg15[%c0_28, %c0_29] : memref<128x64xf32, #tpu.memory_space<vmem>>, vector<128x32xf32>
    tpu.vector_store %arg15[%c0_28, %c0_29], %18 {strides = array<i32>} : memref<128x64xf32, #tpu.memory_space<vmem>>, vector<128x32xf32>,
    %c0_30 = arith.constant 0 : index
    %c32 = arith.constant 32 : index
    %37 = vector.load %arg15[%c0_30, %c32] : memref<128x64xf32, #tpu.memory_space<vmem>>, vector<128x32xf32>
    tpu.vector_store %arg15[%c0_30, %c32], %35 {strides = array<i32>} : memref<128x64xf32, #tpu.memory_space<vmem>>, vector<128x32xf32>,
    %c0_31 = arith.constant 0 : index
    %c0_32 = arith.constant 0 : index
    %38 = vector.load %arg10[%c0_31, %c0_32] : memref<1x16xf32, #tpu.memory_space<vmem>>, vector<1x16xf32>
    %cst_33 = arith.constant dense<0.000000e+00> : vector<1x128xf32>
    %39 = tpu.matmul %38, %1, %cst_33 {dimension_numbers = #tpu.dot_dimension_numbers<[1], [1], [0], [0], [0, 0, 1, 0], [], []>} : vector<1x16xf32>, vector<128x16xf32>, vector<1x128xf32> -> vector<1x128xf32>
    %c0_34 = arith.constant 0 : index
    %c0_35 = arith.constant 0 : index
    %40 = vector.load %arg11[%c0_34, %c0_35] : memref<1x32xf32, #tpu.memory_space<vmem>>, vector<1x32xf32>
    %cst_36 = arith.constant dense<0.000000e+00> : vector<1x128xf32>
    %41 = tpu.matmul %40, %18, %cst_36 {dimension_numbers = #tpu.dot_dimension_numbers<[1], [1], [0], [0], [0, 0, 1, 0], [], []>} : vector<1x32xf32>, vector<128x32xf32>, vector<1x128xf32> -> vector<1x128xf32>
    %42 = arith.addf %39, %41 : vector<1x128xf32>
    %c0_37 = arith.constant 0 : index
    %c0_38 = arith.constant 0 : index
    %43 = vector.load %arg12[%c0_37, %c0_38] : memref<1x32xf32, #tpu.memory_space<vmem>>, vector<1x32xf32>
    %cst_39 = arith.constant dense<0.000000e+00> : vector<1x128xf32>
    %44 = tpu.matmul %43, %35, %cst_39 {dimension_numbers = #tpu.dot_dimension_numbers<[1], [1], [0], [0], [0, 0, 1, 0], [], []>} : vector<1x32xf32>, vector<128x32xf32>, vector<1x128xf32> -> vector<1x128xf32>
    %45 = arith.addf %42, %44 : vector<1x128xf32>
    %c0_40 = arith.constant 0 : index
    %c0_41 = arith.constant 0 : index
    %46 = vector.load %arg3[%c0_40, %c0_41] : memref<1x128xi32, #tpu.memory_space<vmem>>, vector<1x128xi32>
    %47 = tpu.iota {dimensions = array<i32: 0>} : vector<32x128xi32>
    %48 = vector.broadcast %46 : vector<1x128xi32> to vector<32x128xi32>
    %49 = arith.cmpi eq, %47, %48 : vector<32x128xi32>
    %50 = arith.extui %49 : vector<32x128xi1> to vector<32x128xi32>
    %51 = arith.sitofp %50 : vector<32x128xi32> to vector<32x128xf32>
    %cst_42 = arith.constant dense<0.000000e+00> : vector<1x32xf32>
    %52 = tpu.matmul %45, %51, %cst_42 {dimension_numbers = #tpu.dot_dimension_numbers<[1], [1], [0], [0], [0, 0, 1, 0], [], []>} : vector<1x128xf32>, vector<32x128xf32>, vector<1x32xf32> -> vector<1x32xf32>
    %c0_43 = arith.constant 0 : index
    %c0_44 = arith.constant 0 : index
    %53 = memref.load %arg13[%c0_43, %c0_44] : memref<1x1xf32, #tpu.memory_space<smem>>
    %54 = vector.broadcast %53 : f32 to vector<1x32xf32>
    %55 = arith.addf %52, %54 : vector<1x32xf32>
    %cst_45 = arith.constant 0.000000e+00 : f32
    %56 = vector.broadcast %cst_45 : f32 to vector<1x32xf32>
    %57 = arith.maximumf %55, %56 : vector<1x32xf32>
    %c0_46 = arith.constant 0 : index
    %c0_47 = arith.constant 0 : index
    %58 = vector.load %arg14[%c0_46, %c0_47] : memref<1x32xf32, #tpu.memory_space<vmem>>, vector<1x32xf32>
    tpu.vector_store %arg14[%c0_46, %c0_47], %57 {strides = array<i32>} : memref<1x32xf32, #tpu.memory_space<vmem>>, vector<1x32xf32>,
    return
  }
  func.func @transform_0(%arg0: i32) -> (i32, i32) {
    %c0_i32 = arith.constant 0 : i32
    %c0_i32_0 = arith.constant 0 : i32
    %c0_i32_1 = arith.constant 0 : i32
    return %c0_i32, %c0_i32_0 : i32, i32
  }
  func.func @transform_1(%arg0: i32) -> (i32, i32) {
    %c0_i32 = arith.constant 0 : i32
    %c0_i32_0 = arith.constant 0 : i32
    %c0_i32_1 = arith.constant 0 : i32
    return %c0_i32, %c0_i32_0 : i32, i32
  }
  func.func @transform_2(%arg0: i32) -> (i32, i32) {
    %c0_i32 = arith.constant 0 : i32
    %c0_i32_0 = arith.constant 0 : i32
    %c0_i32_1 = arith.constant 0 : i32
    return %c0_i32, %c0_i32_0 : i32, i32
  }
  func.func @transform_3(%arg0: i32) -> (i32, i32) {
    %c0_i32 = arith.constant 0 : i32
    %c0_i32_0 = arith.constant 0 : i32
    %c0_i32_1 = arith.constant 0 : i32
    return %c0_i32, %c0_i32_0 : i32, i32
  }
  func.func @transform_4(%arg0: i32) -> (i32, i32) {
    %c0_i32 = arith.constant 0 : i32
    %c0_i32_0 = arith.constant 0 : i32
    %c0_i32_1 = arith.constant 0 : i32
    return %c0_i32, %c0_i32_0 : i32, i32
  }
  func.func @transform_5(%arg0: i32) -> (i32, i32) {
    %c0_i32 = arith.constant 0 : i32
    %c0_i32_0 = arith.constant 0 : i32
    %c0_i32_1 = arith.constant 0 : i32
    return %c0_i32, %c0_i32_0 : i32, i32
  }
  func.func @transform_6(%arg0: i32) -> (i32, i32) {
    %c0_i32 = arith.constant 0 : i32
    %c0_i32_0 = arith.constant 0 : i32
    %c0_i32_1 = arith.constant 0 : i32
    return %c0_i32, %c0_i32_0 : i32, i32
  }
  func.func @transform_7(%arg0: i32) -> (i32, i32) {
    %c0_i32 = arith.constant 0 : i32
    %c0_i32_0 = arith.constant 0 : i32
    %c0_i32_1 = arith.constant 0 : i32
    return %c0_i32, %c0_i32_0 : i32, i32
  }
  func.func @transform_8(%arg0: i32) -> (i32, i32) {
    %c0_i32 = arith.constant 0 : i32
    %c0_i32_0 = arith.constant 0 : i32
    %c0_i32_1 = arith.constant 0 : i32
    return %c0_i32, %c0_i32_0 : i32, i32
  }
  func.func @transform_9(%arg0: i32) -> (i32, i32) {
    %c0_i32 = arith.constant 0 : i32
    %c0_i32_0 = arith.constant 0 : i32
    %c0_i32_1 = arith.constant 0 : i32
    return %c0_i32, %c0_i32_0 : i32, i32
  }
  func.func @transform_10(%arg0: i32) -> (i32, i32) {
    %c0_i32 = arith.constant 0 : i32
    %c0_i32_0 = arith.constant 0 : i32
    %c0_i32_1 = arith.constant 0 : i32
    return %c0_i32, %c0_i32_0 : i32, i32
  }
  func.func @transform_11(%arg0: i32) -> (i32, i32) {
    %c0_i32 = arith.constant 0 : i32
    %c0_i32_0 = arith.constant 0 : i32
    %c0_i32_1 = arith.constant 0 : i32
    return %c0_i32, %c0_i32_0 : i32, i32
  }
  func.func @transform_12(%arg0: i32) -> (i32, i32) {
    %c0_i32 = arith.constant 0 : i32
    %c0_i32_0 = arith.constant 0 : i32
    %c0_i32_1 = arith.constant 0 : i32
    return %c0_i32, %c0_i32_0 : i32, i32
  }
  func.func @transform_13(%arg0: i32) -> (i32, i32) {
    %c0_i32 = arith.constant 0 : i32
    %c0_i32_0 = arith.constant 0 : i32
    %c0_i32_1 = arith.constant 0 : i32
    return %c0_i32, %c0_i32_0 : i32, i32
  }
  func.func @transform_14(%arg0: i32) -> (i32, i32) {
    %c0_i32 = arith.constant 0 : i32
    %c0_i32_0 = arith.constant 0 : i32
    %c0_i32_1 = arith.constant 0 : i32
    return %c0_i32, %c0_i32_0 : i32, i32
  }
}

</mosaic_0001>

<llo_original>
// kernel: gnn_skip_small_forward_batched.1
$region0: #{gnn_skip_small_forward_batched.1}
  #allocation0 [shape = 'u32[]', space=smem, size = 0x4, offset = 0x4, fixed_abs, tag = 'smem constant byte address 0x4 - core index']
  #allocation1 [shape = 'u32[144,128]{1,0:T(1,128)}', space=vmem, size = 0x12000, scoped, tag = 'internal scratch']
  #allocation2 [shape = 'f32[1,1]{1,0:T(1,128)S(6)}', space=smem, size = 0x200, scoped, tag = 'scoped memory for gnn_skip_small_forward_batched.1']
  %s0 = inlined_call_operand.vmem [shape: f32[128,128], index: 0, kind: input, shape index: {}]
  %s1 = inlined_call_operand.vmem [shape: f32[128,16], index: 1, kind: input, shape index: {}]
  %s2 = inlined_call_operand.vmem [shape: s32[1,128], index: 2, kind: input, shape index: {}]
  %s3 = inlined_call_operand.vmem [shape: f32[16,32], index: 3, kind: input, shape index: {}]
  %s4 = inlined_call_operand.vmem [shape: f32[16,32], index: 4, kind: input, shape index: {}]
  %s5 = inlined_call_operand.vmem [shape: f32[3,32], index: 5, kind: input, shape index: {}]
  %s6 = inlined_call_operand.vmem [shape: f32[32,32], index: 6, kind: input, shape index: {}]
  %s7 = inlined_call_operand.vmem [shape: f32[32,32], index: 7, kind: input, shape index: {}]
  %s8 = inlined_call_operand.vmem [shape: f32[3,32], index: 8, kind: input, shape index: {}]
  %s9 = inlined_call_operand.vmem [shape: f32[1,16], index: 9, kind: input, shape index: {}]
  %s10 = inlined_call_operand.vmem [shape: f32[1,32], index: 10, kind: input, shape index: {}]
  %s11 = inlined_call_operand.vmem [shape: f32[1,32], index: 11, kind: input, shape index: {}]
  %s12 = inlined_call_operand.<no memory space> [shape: f32[1,1], index: 12, kind: input, shape index: {}]
  %s13 = inlined_call_operand.vmem [shape: f32[1,32], index: 13, kind: output, shape index: {0}]
  %s14 = inlined_call_operand.hbm [shape: f32[128,64], index: 14, kind: output, shape index: {1}]
  %15 = xla_tuple %s13, %s14
  %s16 = sld [smem:[#allocation0]]
  $region70: #{gnn_skip_small_forward_batched.1} parent=0
    _
  %s18 = ssub.s32 1, %s16
  %s19 = scalar_select 0, %s18, %s16
  %20 = sst [smem:[#allocation2]] %s12
  $region1: #{gnn_skip_small_forward_batched.1} parent=0
    #allocation3 [shape = 'u8[65536]{0}', space=vmem, size = 0x10000, scoped, tag = 'output window, operand 1, single buffered']
    #allocation4 [shape = 's32[1]{0}', space=sflag, size = 0x4, scoped, tag = 'scoped memory for gnn_skip_small_forward_batched.1']
    %21 = vsyncpa [#allocation4], 0
    // Predicated region
    $region2: #{gnn_skip_small_forward_batched.1} parent=1 // pred_check
      _
    $region3: #{gnn_skip_small_forward_batched.1} parent=1 // pred_check_branch
      %23 = sbr.rel (0) target = $region5
    $region4: #{gnn_skip_small_forward_batched.1} parent=1 // pred_region
      _
    $region5: #{gnn_skip_small_forward_batched.1} parent=1 // pred_fallthru
      _
    // Predicated region
    $region6: #{gnn_skip_small_forward_batched.1} parent=1 // pred_check
      _
    $region7: #{gnn_skip_small_forward_batched.1} parent=1 // pred_check_branch
      %25 = sbr.rel (0) target = $region9
    $region8: #{gnn_skip_small_forward_batched.1} parent=1 // pred_region
      _
    $region9: #{gnn_skip_small_forward_batched.1} parent=1 // pred_fallthru
      _
    // Predicated region
    $region10: #{gnn_skip_small_forward_batched.1} parent=1 // pred_check
      _
    $region11: #{gnn_skip_small_forward_batched.1} parent=1 // pred_check_branch
      %27 = sbr.rel (0) target = $region13
    $region12: #{gnn_skip_small_forward_batched.1} parent=1 // pred_region
      _
    $region13: #{gnn_skip_small_forward_batched.1} parent=1 // pred_fallthru
      _
    // Predicated region
    $region14: #{gnn_skip_small_forward_batched.1} parent=1 // pred_check
      _
    $region15: #{gnn_skip_small_forward_batched.1} parent=1 // pred_check_branch
      %29 = sbr.rel (0) target = $region17
    $region16: #{gnn_skip_small_forward_batched.1} parent=1 // pred_region
      _
    $region17: #{gnn_skip_small_forward_batched.1} parent=1 // pred_fallthru
      _
    // Predicated region
    $region18: #{gnn_skip_small_forward_batched.1} parent=1 // pred_check
      _
    $region19: #{gnn_skip_small_forward_batched.1} parent=1 // pred_check_branch
      %31 = sbr.rel (0) target = $region21
    $region20: #{gnn_skip_small_forward_batched.1} parent=1 // pred_region
      _
    $region21: #{gnn_skip_small_forward_batched.1} parent=1 // pred_fallthru
      _
    // Predicated region
    $region22: #{gnn_skip_small_forward_batched.1} parent=1 // pred_check
      _
    $region23: #{gnn_skip_small_forward_batched.1} parent=1 // pred_check_branch
      %33 = sbr.rel (0) target = $region25
    $region24: #{gnn_skip_small_forward_batched.1} parent=1 // pred_region
      _
    $region25: #{gnn_skip_small_forward_batched.1} parent=1 // pred_fallthru
      _
    // Predicated region
    $region26: #{gnn_skip_small_forward_batched.1} parent=1 // pred_check
      _
    $region27: #{gnn_skip_small_forward_batched.1} parent=1 // pred_check_branch
      %35 = sbr.rel (0) target = $region29
    $region28: #{gnn_skip_small_forward_batched.1} parent=1 // pred_region
      _
    $region29: #{gnn_skip_small_forward_batched.1} parent=1 // pred_fallthru
      _
    // Predicated region
    $region30: #{gnn_skip_small_forward_batched.1} parent=1 // pred_check
      _
    $region31: #{gnn_skip_small_forward_batched.1} parent=1 // pred_check_branch
      %37 = sbr.rel (0) target = $region33
    $region32: #{gnn_skip_small_forward_batched.1} parent=1 // pred_region
      _
    $region33: #{gnn_skip_small_forward_batched.1} parent=1 // pred_fallthru
      _
    // Predicated region
    $region34: #{gnn_skip_small_forward_batched.1} parent=1 // pred_check
      _
    $region35: #{gnn_skip_small_forward_batched.1} parent=1 // pred_check_branch
      %39 = sbr.rel (0) target = $region37
    $region36: #{gnn_skip_small_forward_batched.1} parent=1 // pred_region
      _
    $region37: #{gnn_skip_small_forward_batched.1} parent=1 // pred_fallthru
      _
    // Predicated region
    $region38: #{gnn_skip_small_forward_batched.1} parent=1 // pred_check
      _
    $region39: #{gnn_skip_small_forward_batched.1} parent=1 // pred_check_branch
      %41 = sbr.rel (0) target = $region41
    $region40: #{gnn_skip_small_forward_batched.1} parent=1 // pred_region
      _
    $region41: #{gnn_skip_small_forward_batched.1} parent=1 // pred_fallthru
      _
    // Predicated region
    $region42: #{gnn_skip_small_forward_batched.1} parent=1 // pred_check
      _
    $region43: #{gnn_skip_small_forward_batched.1} parent=1 // pred_check_branch
      %43 = sbr.rel (0) target = $region45
    $region44: #{gnn_skip_small_forward_batched.1} parent=1 // pred_region
      _
    $region45: #{gnn_skip_small_forward_batched.1} parent=1 // pred_fallthru
      _
    // Predicated region
    $region46: #{gnn_skip_small_forward_batched.1} parent=1 // pred_check
      _
    $region47: #{gnn_skip_small_forward_batched.1} parent=1 // pred_check_branch
      %45 = sbr.rel (0) target = $region49
    $region48: #{gnn_skip_small_forward_batched.1} parent=1 // pred_region
      _
    $region49: #{gnn_skip_small_forward_batched.1} parent=1 // pred_fallthru
      _
    // Predicated region
    $region50: #{gnn_skip_small_forward_batched.1} parent=1 // pred_check
      _
    $region51: #{gnn_skip_small_forward_batched.1} parent=1 // pred_check_branch
      %47 = sbr.rel (0) target = $region53
    $region52: #{gnn_skip_small_forward_batched.1} parent=1 // pred_region
      _
    $region53: #{gnn_skip_small_forward_batched.1} parent=1 // pred_fallthru
      _
    %v48 = vld [vmem:[%s0] sm:$0xff]
    %v49 = vld [vmem:[%s0 + $0x8] sm:$0xff]
    %v50 = vld [vmem:[%s0 + $0x10] sm:$0xff]
    %v51 = vld [vmem:[%s0 + $0x18] sm:$0xff]
    %v52 = vld [vmem:[%s0 + $0x20] sm:$0xff]
    %v53 = vld [vmem:[%s0 + $0x28] sm:$0xff]
    %v54 = vld [vmem:[%s0 + $0x30] sm:$0xff]
    %v55 = vld [vmem:[%s0 + $0x38] sm:$0xff]
    %v56 = vld [vmem:[%s0 + $0x40] sm:$0xff]
    %v57 = vld [vmem:[%s0 + $0x48] sm:$0xff]
    %v58 = vld [vmem:[%s0 + $0x50] sm:$0xff]
    %v59 = vld [vmem:[%s0 + $0x58] sm:$0xff]
    %v60 = vld [vmem:[%s0 + $0x60] sm:$0xff]
    %v61 = vld [vmem:[%s0 + $0x68] sm:$0xff]
    %v62 = vld [vmem:[%s0 + $0x70] sm:$0xff]
    %v63 = vld [vmem:[%s0 + $0x78] sm:$0xff]
    %v64 = vld [vmem:[%s1] sm:$0xff]
    %v65 = vld [vmem:[%s1 + $0x8] sm:$0xff]
    %v66 = vld [vmem:[%s1 + $0x10] sm:$0xff]
    %v67 = vld [vmem:[%s1 + $0x18] sm:$0xff]
    %v68 = vld [vmem:[%s1 + $0x20] sm:$0xff]
    %v69 = vld [vmem:[%s1 + $0x28] sm:$0xff]
    %v70 = vld [vmem:[%s1 + $0x30] sm:$0xff]
    %v71 = vld [vmem:[%s1 + $0x38] sm:$0xff]
    %v72 = vld [vmem:[%s1 + $0x40] sm:$0xff]
    %v73 = vld [vmem:[%s1 + $0x48] sm:$0xff]
    %v74 = vld [vmem:[%s1 + $0x50] sm:$0xff]
    %v75 = vld [vmem:[%s1 + $0x58] sm:$0xff]
    %v76 = vld [vmem:[%s1 + $0x60] sm:$0xff]
    %v77 = vld [vmem:[%s1 + $0x68] sm:$0xff]
    %v78 = vld [vmem:[%s1 + $0x70] sm:$0xff]
    %v79 = vld [vmem:[%s1 + $0x78] sm:$0xff]
    %80 = vmatprep.subr.mxu0 0.0
    %81 = vmatpush1.msra.mxu0 %v64
    %82 = vmatprep.subr.mxu0 0.0
    %83 = vmatpush1.msra.mxu0 %v65
    %84 = vmatprep.subr.mxu0 0.0
    %85 = vmatpush1.msra.mxu0 %v66
    %86 = vmatprep.subr.mxu0 0.0
    %87 = vmatpush1.msra.mxu0 %v67
    %88 = vmatprep.subr.mxu0 0.0
    %89 = vmatpush1.msra.mxu0 %v68
    %90 = vmatprep.subr.mxu0 0.0
    %91 = vmatpush1.msra.mxu0 %v69
    %92 = vmatprep.subr.mxu0 0.0
    %93 = vmatpush1.msra.mxu0 %v70
    %94 = vmatprep.subr.mxu0 0.0
    %95 = vmatpush1.msra.mxu0 %v71
    %96 = vmatprep.subr.mxu0 0.0
    %97 = vmatpush1.msra.mxu0 %v72
    %98 = vmatprep.subr.mxu0 0.0
    %99 = vmatpush1.msra.mxu0 %v73
    %100 = vmatprep.subr.mxu0 0.0
    %101 = vmatpush1.msra.mxu0 %v74
    %102 = vmatprep.subr.mxu0 0.0
    %103 = vmatpush1.msra.mxu0 %v75
    %104 = vmatprep.subr.mxu0 0.0
    %105 = vmatpush1.msra.mxu0 %v76
    %106 = vmatprep.subr.mxu0 0.0
    %107 = vmatpush1.msra.mxu0 %v77
    %108 = vmatprep.subr.mxu0 0.0
    %109 = vmatpush1.msra.mxu0 %v78
    %110 = vmatprep.subr.mxu0 0.0
    %111 = vmatpush1.msra.mxu0 %v79
    %112 = vmatprep.subr.mxu0 0.0
    %113 = vmatpush1.msra.mxu0 0.0
    %114 = vmatprep.subr.mxu0 0.0
    %115 = vmatpush1.msra.mxu0 0.0
    %116 = vmatprep.subr.mxu0 0.0
    %117 = vmatpush1.msra.mxu0 0.0
    %118 = vmatprep.subr.mxu0 0.0
    %119 = vmatpush1.msra.mxu0 0.0
    %120 = vmatprep.subr.mxu0 0.0
    %121 = vmatpush1.msra.mxu0 0.0
    %122 = vmatprep.subr.mxu0 0.0
    %123 = vmatpush1.msra.mxu0 0.0
    %124 = vmatprep.subr.mxu0 0.0
    %125 = vmatpush1.msra.mxu0 0.0
    %126 = vmatprep.subr.mxu0 0.0
    %127 = vmatpush1.msra.mxu0 0.0
    %128 = vmatprep.subr.mxu0 0.0
    %129 = vmatpush1.msra.mxu0 0.0
    %130 = vmatprep.subr.mxu0 0.0
    %131 = vmatpush1.msra.mxu0 0.0
    %132 = vmatprep.subr.mxu0 0.0
    %133 = vmatpush1.msra.mxu0 0.0
    %134 = vmatprep.subr.mxu0 0.0
    %135 = vmatpush1.msra.mxu0 0.0
    %136 = vmatprep.subr.mxu0 0.0
    %137 = vmatpush1.msra.mxu0 0.0
    %138 = vmatprep.subr.mxu0 0.0
    %139 = vmatpush1.msra.mxu0 0.0
    %140 = vmatprep.subr.mxu0 0.0
    %141 = vmatpush1.msra.mxu0 0.0
    %142 = vmatprep.subr.mxu0 0.0
    %143 = vmatpush1.msra.mxu0 0.0
    %144 = vmatprep.mubr.f32.mxu0 0.0
    %145 = vmatmul.mubr.f32.gmra.mrb[0].mxu0 %v48
    %v146 = vpop.f32.mrb[0].mxu0
    %v147 = vadd.f32 0.0, %v146
    %v148 = vpop.f32.mrb[0].mxu0
    %149 = vmatprep.mubr.f32.mxu0 0.0
    %150 = vmatmul.mubr.f32.gmra.mrb[0].mxu0 %v49
    %v151 = vpop.f32.mrb[0].mxu0
    %v152 = vadd.f32 0.0, %v151
    %v153 = vpop.f32.mrb[0].mxu0
    %154 = vmatprep.mubr.f32.mxu0 0.0
    %155 = vmatmul.mubr.f32.gmra.mrb[0].mxu0 %v50
    %v156 = vpop.f32.mrb[0].mxu0
    %v157 = vadd.f32 0.0, %v156
    %v158 = vpop.f32.mrb[0].mxu0
    %159 = vmatprep.mubr.f32.mxu0 0.0
    %160 = vmatmul.mubr.f32.gmra.mrb[0].mxu0 %v51
    %v161 = vpop.f32.mrb[0].mxu0
    %v162 = vadd.f32 0.0, %v161
    %v163 = vpop.f32.mrb[0].mxu0
    %164 = vmatprep.mubr.f32.mxu0 0.0
    %165 = vmatmul.mubr.f32.gmra.mrb[0].mxu0 %v52
    %v166 = vpop.f32.mrb[0].mxu0
    %v167 = vadd.f32 0.0, %v166
    %v168 = vpop.f32.mrb[0].mxu0
    %169 = vmatprep.mubr.f32.mxu0 0.0
    %170 = vmatmul.mubr.f32.gmra.mrb[0].mxu0 %v53
    %v171 = vpop.f32.mrb[0].mxu0
    %v172 = vadd.f32 0.0, %v171
    %v173 = vpop.f32.mrb[0].mxu0
    %174 = vmatprep.mubr.f32.mxu0 0.0
    %175 = vmatmul.mubr.f32.gmra.mrb[0].mxu0 %v54
    %v176 = vpop.f32.mrb[0].mxu0
    %v177 = vadd.f32 0.0, %v176
    %v178 = vpop.f32.mrb[0].mxu0
    %179 = vmatprep.mubr.f32.mxu0 0.0
    %180 = vmatmul.mubr.f32.gmra.mrb[0].mxu0 %v55
    %v181 = vpop.f32.mrb[0].mxu0
    %v182 = vadd.f32 0.0, %v181
    %v183 = vpop.f32.mrb[0].mxu0
    %184 = vmatprep.mubr.f32.mxu0 0.0
    %185 = vmatmul.mubr.f32.gmra.mrb[0].mxu0 %v56
    %v186 = vpop.f32.mrb[0].mxu0
    %v187 = vadd.f32 0.0, %v186
    %v188 = vpop.f32.mrb[0].mxu0
    %189 = vmatprep.mubr.f32.mxu0 0.0
    %190 = vmatmul.mubr.f32.gmra.mrb[0].mxu0 %v57
    %v191 = vpop.f32.mrb[0].mxu0
    %v192 = vadd.f32 0.0, %v191
    %v193 = vpop.f32.mrb[0].mxu0
    %194 = vmatprep.mubr.f32.mxu0 0.0
    %195 = vmatmul.mubr.f32.gmra.mrb[0].mxu0 %v58
    %v196 = vpop.f32.mrb[0].mxu0
    %v197 = vadd.f32 0.0, %v196
    %v198 = vpop.f32.mrb[0].mxu0
    %199 = vmatprep.mubr.f32.mxu0 0.0
    %200 = vmatmul.mubr.f32.gmra.mrb[0].mxu0 %v59
    %v201 = vpop.f32.mrb[0].mxu0
    %v202 = vadd.f32 0.0, %v201
    %v203 = vpop.f32.mrb[0].mxu0
    %204 = vmatprep.mubr.f32.mxu0 0.0
    %205 = vmatmul.mubr.f32.gmra.mrb[0].mxu0 %v60
    %v206 = vpop.f32.mrb[0].mxu0
    %v207 = vadd.f32 0.0, %v206
    %v208 = vpop.f32.mrb[0].mxu0
    %209 = vmatprep.mubr.f32.mxu0 0.0
    %210 = vmatmul.mubr.f32.gmra.mrb[0].mxu0 %v61
    %v211 = vpop.f32.mrb[0].mxu0
    %v212 = vadd.f32 0.0, %v211
    %v213 = vpop.f32.mrb[0].mxu0
    %214 = vmatprep.mubr.f32.mxu0 0.0
    %215 = vmatmul.mubr.f32.gmra.mrb[0].mxu0 %v62
    %v216 = vpop.f32.mrb[0].mxu0
    %v217 = vadd.f32 0.0, %v216
    %v218 = vpop.f32.mrb[0].mxu0
    %219 = vmatprep.mubr.f32.mxu0 0.0
    %220 = vmatmul.mubr.f32.gmra.mrb[0].mxu0 %v63
    %v221 = vpop.f32.mrb[0].mxu0
    %v222 = vadd.f32 0.0, %v221
    %v223 = vpop.f32.mrb[0].mxu0
    %224 = vdwg.mxu0
    %v225 = vld [vmem:[%s3] sm:$0xff]
    %v226 = vld [vmem:[%s3 + $0x8] sm:$0xff]
    %v227 = vld [vmem:[%s4] sm:$0xff]
    %v228 = vld [vmem:[%s4 + $0x8] sm:$0xff]
    %vm229 = vcmask 130048
    %v231 = vsel %vm229, %v147, 0
    %v234 = vsel %vm229, %v152, 0
    %v237 = vsel %vm229, %v157, 0
    %v240 = vsel %vm229, %v162, 0
    %v243 = vsel %vm229, %v167, 0
    %v246 = vsel %vm229, %v172, 0
    %v249 = vsel %vm229, %v177, 0
    %v252 = vsel %vm229, %v182, 0
    %v255 = vsel %vm229, %v187, 0
    %v258 = vsel %vm229, %v192, 0
    %v261 = vsel %vm229, %v197, 0
    %v264 = vsel %vm229, %v202, 0
    %v267 = vsel %vm229, %v207, 0
    %v270 = vsel %vm229, %v212, 0
    %v273 = vsel %vm229, %v217, 0
    %v276 = vsel %vm229, %v222, 0
    %278 = vmatprep.subr.mxu0 0.0
    %279 = vmatpush1.msra.mxu0 %v227
    %280 = vmatprep.subr.mxu0 0.0
    %281 = vmatpush1.msra.mxu0 %v228
    %282 = vmatprep.subr.mxu0 0.0
    %283 = vmatpush1.msra.mxu0 0.0
    %284 = vmatprep.subr.mxu0 0.0
    %285 = vmatpush1.msra.mxu0 0.0
    %286 = vmatprep.subr.mxu0 0.0
    %287 = vmatpush1.msra.mxu0 0.0
    %288 = vmatprep.subr.mxu0 0.0
    %289 = vmatpush1.msra.mxu0 0.0
    %290 = vmatprep.subr.mxu0 0.0
    %291 = vmatpush1.msra.mxu0 0.0
    %292 = vmatprep.subr.mxu0 0.0
    %293 = vmatpush1.msra.mxu0 0.0
    %294 = vmatprep.subr.mxu0 0.0
    %295 = vmatpush1.msra.mxu0 0.0
    %296 = vmatprep.subr.mxu0 0.0
    %297 = vmatpush1.msra.mxu0 0.0
    %298 = vmatprep.subr.mxu0 0.0
    %299 = vmatpush1.msra.mxu0 0.0
    %300 = vmatprep.subr.mxu0 0.0
    %301 = vmatpush1.msra.mxu0 0.0
    %302 = vmatprep.subr.mxu0 0.0
    %303 = vmatpush1.msra.mxu0 0.0
    %304 = vmatprep.subr.mxu0 0.0
    %305 = vmatpush1.msra.mxu0 0.0
    %306 = vmatprep.subr.mxu0 0.0
    %307 = vmatpush1.msra.mxu0 0.0
    %308 = vmatprep.subr.mxu0 0.0
    %309 = vmatpush1.msra.mxu0 0.0
    %310 = vmatprep.subr.mxu0 0.0
    %311 = vmatpush1.msra.mxu0 0.0
    %312 = vmatprep.subr.mxu0 0.0
    %313 = vmatpush1.msra.mxu0 0.0
    %314 = vmatprep.subr.mxu0 0.0
    %315 = vmatpush1.msra.mxu0 0.0
    %316 = vmatprep.subr.mxu0 0.0
    %317 = vmatpush1.msra.mxu0 0.0
    %318 = vmatprep.subr.mxu0 0.0
    %319 = vmatpush1.msra.mxu0 0.0
    %320 = vmatprep.subr.mxu0 0.0
    %321 = vmatpush1.msra.mxu0 0.0
    %322 = vmatprep.subr.mxu0 0.0
    %323 = vmatpush1.msra.mxu0 0.0
    %324 = vmatprep.subr.mxu0 0.0
    %325 = vmatpush1.msra.mxu0 0.0
    %326 = vmatprep.subr.mxu0 0.0
    %327 = vmatpush1.msra.mxu0 0.0
    %328 = vmatprep.subr.mxu0 0.0
    %329 = vmatpush1.msra.mxu0 0.0
    %330 = vmatprep.subr.mxu0 0.0
    %331 = vmatpush1.msra.mxu0 0.0
    %332 = vmatprep.subr.mxu0 0.0
    %333 = vmatpush1.msra.mxu0 0.0
    %334 = vmatprep.subr.mxu0 0.0
    %335 = vmatpush1.msra.mxu0 0.0
    %336 = vmatprep.subr.mxu0 0.0
    %337 = vmatpush1.msra.mxu0 0.0
    %338 = vmatprep.subr.mxu0 0.0
    %339 = vmatpush1.msra.mxu0 0.0
    %340 = vmatprep.subr.mxu0 0.0
    %341 = vmatpush1.msra.mxu0 0.0
    %342 = vmatprep.mubr.f32.mxu0 0.0
    %343 = vmatmul.mubr.f32.gmra.mrb[0].mxu0 %v231
    %v344 = vpop.f32.mrb[0].mxu0
    %v345 = vadd.f32 0.0, %v344
    %v346 = vpop.f32.mrb[0].mxu0
    %347 = vmatprep.mubr.f32.mxu0 0.0
    %348 = vmatmul.mubr.f32.gmra.mrb[0].mxu0 %v234
    %v349 = vpop.f32.mrb[0].mxu0
    %v350 = vadd.f32 0.0, %v349
    %v351 = vpop.f32.mrb[0].mxu0
    %352 = vmatprep.mubr.f32.mxu0 0.0
    %353 = vmatmul.mubr.f32.gmra.mrb[0].mxu0 %v237
    %v354 = vpop.f32.mrb[0].mxu0
    %v355 = vadd.f32 0.0, %v354
    %v356 = vpop.f32.mrb[0].mxu0
    %357 = vmatprep.mubr.f32.mxu0 0.0
    %358 = vmatmul.mubr.f32.gmra.mrb[0].mxu0 %v240
    %v359 = vpop.f32.mrb[0].mxu0
    %v360 = vadd.f32 0.0, %v359
    %v361 = vpop.f32.mrb[0].mxu0
    %362 = vmatprep.mubr.f32.mxu0 0.0
    %363 = vmatmul.mubr.f32.gmra.mrb[0].mxu0 %v243
    %v364 = vpop.f32.mrb[0].mxu0
    %v365 = vadd.f32 0.0, %v364
    %v366 = vpop.f32.mrb[0].mxu0
    %367 = vmatprep.mubr.f32.mxu0 0.0
    %368 = vmatmul.mubr.f32.gmra.mrb[0].mxu0 %v246
    %v369 = vpop.f32.mrb[0].mxu0
    %v370 = vadd.f32 0.0, %v369
    %v371 = vpop.f32.mrb[0].mxu0
    %372 = vmatprep.mubr.f32.mxu0 0.0
    %373 = vmatmul.mubr.f32.gmra.mrb[0].mxu0 %v249
    %v374 = vpop.f32.mrb[0].mxu0
    %v375 = vadd.f32 0.0, %v374
    %v376 = vpop.f32.mrb[0].mxu0
    %377 = vmatprep.mubr.f32.mxu0 0.0
    %378 = vmatmul.mubr.f32.gmra.mrb[0].mxu0 %v252
    %v379 = vpop.f32.mrb[0].mxu0
    %v380 = vadd.f32 0.0, %v379
    %v381 = vpop.f32.mrb[0].mxu0
    %382 = vmatprep.mubr.f32.mxu0 0.0
    %383 = vmatmul.mubr.f32.gmra.mrb[0].mxu0 %v255
    %v384 = vpop.f32.mrb[0].mxu0
    %v385 = vadd.f32 0.0, %v384
    %v386 = vpop.f32.mrb[0].mxu0
    %387 = vmatprep.mubr.f32.mxu0 0.0
    %388 = vmatmul.mubr.f32.gmra.mrb[0].mxu0 %v258
    %v389 = vpop.f32.mrb[0].mxu0
    %v390 = vadd.f32 0.0, %v389
    %v391 = vpop.f32.mrb[0].mxu0
    %392 = vmatprep.mubr.f32.mxu0 0.0
    %393 = vmatmul.mubr.f32.gmra.mrb[0].mxu0 %v261
    %v394 = vpop.f32.mrb[0].mxu0
    %v395 = vadd.f32 0.0, %v394
    %v396 = vpop.f32.mrb[0].mxu0
    %397 = vmatprep.mubr.f32.mxu0 0.0
    %398 = vmatmul.mubr.f32.gmra.mrb[0].mxu0 %v264
    %v399 = vpop.f32.mrb[0].mxu0
    %v400 = vadd.f32 0.0, %v399
    %v401 = vpop.f32.mrb[0].mxu0
    %402 = vmatprep.mubr.f32.mxu0 0.0
    %403 = vmatmul.mubr.f32.gmra.mrb[0].mxu0 %v267
    %v404 = vpop.f32.mrb[0].mxu0
    %v405 = vadd.f32 0.0, %v404
    %v406 = vpop.f32.mrb[0].mxu0
    %407 = vmatprep.mubr.f32.mxu0 0.0
    %408 = vmatmul.mubr.f32.gmra.mrb[0].mxu0 %v270
    %v409 = vpop.f32.mrb[0].mxu0
    %v410 = vadd.f32 0.0, %v409
    %v411 = vpop.f32.mrb[0].mxu0
    %412 = vmatprep.mubr.f32.mxu0 0.0
    %413 = vmatmul.mubr.f32.gmra.mrb[0].mxu0 %v273
    %v414 = vpop.f32.mrb[0].mxu0
    %v415 = vadd.f32 0.0, %v414
    %v416 = vpop.f32.mrb[0].mxu0
    %417 = vmatprep.mubr.f32.mxu0 0.0
    %418 = vmatmul.mubr.f32.gmra.mrb[0].mxu0 %v276
    %v419 = vpop.f32.mrb[0].mxu0
    %v420 = vadd.f32 0.0, %v419
    %v421 = vpop.f32.mrb[0].mxu0
    %422 = vdwg.mxu0
    %v424 = vsel %vm229, %v64, 0
    %v427 = vsel %vm229, %v65, 0
    %v430 = vsel %vm229, %v66, 0
    %v433 = vsel %vm229, %v67, 0
    %v436 = vsel %vm229, %v68, 0
    %v439 = vsel %vm229, %v69, 0
    %v442 = vsel %vm229, %v70, 0
    %v445 = vsel %vm229, %v71, 0
    %v448 = vsel %vm229, %v72, 0
    %v451 = vsel %vm229, %v73, 0
    %v454 = vsel %vm229, %v74, 0
    %v457 = vsel %vm229, %v75, 0
    %v460 = vsel %vm229, %v76, 0
    %v463 = vsel %vm229, %v77, 0
    %v466 = vsel %vm229, %v78, 0
    %v469 = vsel %vm229, %v79, 0
    %471 = vmatprep.subr.mxu0 0.0
    %472 = vmatpush1.msra.mxu0 %v225
    %473 = vmatprep.subr.mxu0 0.0
    %474 = vmatpush1.msra.mxu0 %v226
    %475 = vmatprep.subr.mxu0 0.0
    %476 = vmatpush1.msra.mxu0 0.0
    %477 = vmatprep.subr.mxu0 0.0
    %478 = vmatpush1.msra.mxu0 0.0
    %479 = vmatprep.subr.mxu0 0.0
    %480 = vmatpush1.msra.mxu0 0.0
    %481 = vmatprep.subr.mxu0 0.0
    %482 = vmatpush1.msra.mxu0 0.0
    %483 = vmatprep.subr.mxu0 0.0
    %484 = vmatpush1.msra.mxu0 0.0
    %485 = vmatprep.subr.mxu0 0.0
    %486 = vmatpush1.msra.mxu0 0.0
    %487 = vmatprep.subr.mxu0 0.0
    %488 = vmatpush1.msra.mxu0 0.0
    %489 = vmatprep.subr.mxu0 0.0
    %490 = vmatpush1.msra.mxu0 0.0
    %491 = vmatprep.subr.mxu0 0.0
    %492 = vmatpush1.msra.mxu0 0.0
    %493 = vmatprep.subr.mxu0 0.0
    %494 = vmatpush1.msra.mxu0 0.0
    %495 = vmatprep.subr.mxu0 0.0
    %496 = vmatpush1.msra.mxu0 0.0
    %497 = vmatprep.subr.mxu0 0.0
    %498 = vmatpush1.msra.mxu0 0.0
    %499 = vmatprep.subr.mxu0 0.0
    %500 = vmatpush1.msra.mxu0 0.0
    %501 = vmatprep.subr.mxu0 0.0
    %502 = vmatpush1.msra.mxu0 0.0
    %503 = vmatprep.subr.mxu0 0.0
    %504 = vmatpush1.msra.mxu0 0.0
    %505 = vmatprep.subr.mxu0 0.0
    %506 = vmatpush1.msra.mxu0 0.0
    %507 = vmatprep.subr.mxu0 0.0
    %508 = vmatpush1.msra.mxu0 0.0
    %509 = vmatprep.subr.mxu0 0.0
    %510 = vmatpush1.msra.mxu0 0.0
    %511 = vmatprep.subr.mxu0 0.0
    %512 = vmatpush1.msra.mxu0 0.0
    %513 = vmatprep.subr.mxu0 0.0
    %514 = vmatpush1.msra.mxu0 0.0
    %515 = vmatprep.subr.mxu0 0.0
    %516 = vmatpush1.msra.mxu0 0.0
    %517 = vmatprep.subr.mxu0 0.0
    %518 = vmatpush1.msra.mxu0 0.0
    %519 = vmatprep.subr.mxu0 0.0
    %520 = vmatpush1.msra.mxu0 0.0
    %521 = vmatprep.subr.mxu0 0.0
    %522 = vmatpush1.msra.mxu0 0.0
    %523 = vmatprep.subr.mxu0 0.0
    %524 = vmatpush1.msra.mxu0 0.0
    %525 = vmatprep.subr.mxu0 0.0
    %526 = vmatpush1.msra.mxu0 0.0
    %527 = vmatprep.subr.mxu0 0.0
    %528 = vmatpush1.msra.mxu0 0.0
    %529 = vmatprep.subr.mxu0 0.0
    %530 = vmatpush1.msra.mxu0 0.0
    %531 = vmatprep.subr.mxu0 0.0
    %532 = vmatpush1.msra.mxu0 0.0
    %533 = vmatprep.subr.mxu0 0.0
    %534 = vmatpush1.msra.mxu0 0.0
    %535 = vmatprep.mubr.f32.mxu0 0.0
    %536 = vmatmul.mubr.f32.gmra.mrb[0].mxu0 %v424
    %v537 = vpop.f32.mrb[0].mxu0
    %v538 = vadd.f32 %v345, %v537
    %v539 = vpop.f32.mrb[0].mxu0
    %540 = vmatprep.mubr.f32.mxu0 0.0
    %541 = vmatmul.mubr.f32.gmra.mrb[0].mxu0 %v427
    %v542 = vpop.f32.mrb[0].mxu0
    %v543 = vadd.f32 %v350, %v542
    %v544 = vpop.f32.mrb[0].mxu0
    %545 = vmatprep.mubr.f32.mxu0 0.0
    %546 = vmatmul.mubr.f32.gmra.mrb[0].mxu0 %v430
    %v547 = vpop.f32.mrb[0].mxu0
    %v548 = vadd.f32 %v355, %v547
    %v549 = vpop.f32.mrb[0].mxu0
    %550 = vmatprep.mubr.f32.mxu0 0.0
    %551 = vmatmul.mubr.f32.gmra.mrb[0].mxu0 %v433
    %v552 = vpop.f32.mrb[0].mxu0
    %v553 = vadd.f32 %v360, %v552
    %v554 = vpop.f32.mrb[0].mxu0
    %555 = vmatprep.mubr.f32.mxu0 0.0
    %556 = vmatmul.mubr.f32.gmra.mrb[0].mxu0 %v436
    %v557 = vpop.f32.mrb[0].mxu0
    %v558 = vadd.f32 %v365, %v557
    %v559 = vpop.f32.mrb[0].mxu0
    %560 = vmatprep.mubr.f32.mxu0 0.0
    %561 = vmatmul.mubr.f32.gmra.mrb[0].mxu0 %v439
    %v562 = vpop.f32.mrb[0].mxu0
    %v563 = vadd.f32 %v370, %v562
    %v564 = vpop.f32.mrb[0].mxu0
    %565 = vmatprep.mubr.f32.mxu0 0.0
    %566 = vmatmul.mubr.f32.gmra.mrb[0].mxu0 %v442
    %v567 = vpop.f32.mrb[0].mxu0
    %v568 = vadd.f32 %v375, %v567
    %v569 = vpop.f32.mrb[0].mxu0
    %570 = vmatprep.mubr.f32.mxu0 0.0
    %571 = vmatmul.mubr.f32.gmra.mrb[0].mxu0 %v445
    %v572 = vpop.f32.mrb[0].mxu0
    %v573 = vadd.f32 %v380, %v572
    %v574 = vpop.f32.mrb[0].mxu0
    %575 = vmatprep.mubr.f32.mxu0 0.0
    %576 = vmatmul.mubr.f32.gmra.mrb[0].mxu0 %v448
    %v577 = vpop.f32.mrb[0].mxu0
    %v578 = vadd.f32 %v385, %v577
    %v579 = vpop.f32.mrb[0].mxu0
    %580 = vmatprep.mubr.f32.mxu0 0.0
    %581 = vmatmul.mubr.f32.gmra.mrb[0].mxu0 %v451
    %v582 = vpop.f32.mrb[0].mxu0
    %v583 = vadd.f32 %v390, %v582
    %v584 = vpop.f32.mrb[0].mxu0
    %585 = vmatprep.mubr.f32.mxu0 0.0
    %586 = vmatmul.mubr.f32.gmra.mrb[0].mxu0 %v454
    %v587 = vpop.f32.mrb[0].mxu0
    %v588 = vadd.f32 %v395, %v587
    %v589 = vpop.f32.mrb[0].mxu0
    %590 = vmatprep.mubr.f32.mxu0 0.0
    %591 = vmatmul.mubr.f32.gmra.mrb[0].mxu0 %v457
    %v592 = vpop.f32.mrb[0].mxu0
    %v593 = vadd.f32 %v400, %v592
    %v594 = vpop.f32.mrb[0].mxu0
    %595 = vmatprep.mubr.f32.mxu0 0.0
    %596 = vmatmul.mubr.f32.gmra.mrb[0].mxu0 %v460
    %v597 = vpop.f32.mrb[0].mxu0
    %v598 = vadd.f32 %v405, %v597
    %v599 = vpop.f32.mrb[0].mxu0
    %600 = vmatprep.mubr.f32.mxu0 0.0
    %601 = vmatmul.mubr.f32.gmra.mrb[0].mxu0 %v463
    %v602 = vpop.f32.mrb[0].mxu0
    %v603 = vadd.f32 %v410, %v602
    %v604 = vpop.f32.mrb[0].mxu0
    %605 = vmatprep.mubr.f32.mxu0 0.0
    %606 = vmatmul.mubr.f32.gmra.mrb[0].mxu0 %v466
    %v607 = vpop.f32.mrb[0].mxu0
    %v608 = vadd.f32 %v415, %v607
    %v609 = vpop.f32.mrb[0].mxu0
    %610 = vmatprep.mubr.f32.mxu0 0.0
    %611 = vmatmul.mubr.f32.gmra.mrb[0].mxu0 %v469
    %v612 = vpop.f32.mrb[0].mxu0
    %v613 = vadd.f32 %v420, %v612
    %v614 = vpop.f32.mrb[0].mxu0
    %615 = vdwg.mxu0
    %v616 = vld [vmem:[%s5] sm:$0x1]
    %v617 = vlaneseq
    %v618 = vshrl.u32 %v617, 7
    %v619 = vsub.s32 0, %v618
    %v620 = vrot.slane %v616, %v619
    %v621 = vadd.f32 %v538, %v620
    %v622 = vadd.f32 %v543, %v620
    %v623 = vadd.f32 %v548, %v620
    %v624 = vadd.f32 %v553, %v620
    %v625 = vadd.f32 %v558, %v620
    %v626 = vadd.f32 %v563, %v620
    %v627 = vadd.f32 %v568, %v620
    %v628 = vadd.f32 %v573, %v620
    %v629 = vadd.f32 %v578, %v620
    %v630 = vadd.f32 %v583, %v620
    %v631 = vadd.f32 %v588, %v620
    %v632 = vadd.f32 %v593, %v620
    %v633 = vadd.f32 %v598, %v620
    %v634 = vadd.f32 %v603, %v620
    %v635 = vadd.f32 %v608, %v620
    %v636 = vadd.f32 %v613, %v620
    %v637 = vmax.f32 %v621, 0.0
    %v638 = vmax.f32 %v622, 0.0
    %v639 = vmax.f32 %v623, 0.0
    %v640 = vmax.f32 %v624, 0.0
    %v641 = vmax.f32 %v625, 0.0
    %v642 = vmax.f32 %v626, 0.0
    %v643 = vmax.f32 %v627, 0.0
    %v644 = vmax.f32 %v628, 0.0
    %v645 = vmax.f32 %v629, 0.0
    %v646 = vmax.f32 %v630, 0.0
    %v647 = vmax.f32 %v631, 0.0
    %v648 = vmax.f32 %v632, 0.0
    %v649 = vmax.f32 %v633, 0.0
    %v650 = vmax.f32 %v634, 0.0
    %v651 = vmax.f32 %v635, 0.0
    %v652 = vmax.f32 %v636, 0.0
    %v653 = vld [vmem:[%s5 + $0x1] sm:$0x1]
    %v654 = vlaneseq
    %v655 = vshrl.u32 %v654, 7
    %v656 = vsub.s32 0, %v655
    %v657 = vrot.slane %v653, %v656
    %v658 = vmul.f32 %v637, %v657
    %v659 = vmul.f32 %v638, %v657
    %v660 = vmul.f32 %v639, %v657
    %v661 = vmul.f32 %v640, %v657
    %v662 = vmul.f32 %v641, %v657
    %v663 = vmul.f32 %v642, %v657
    %v664 = vmul.f32 %v643, %v657
    %v665 = vmul.f32 %v644, %v657
    %v666 = vmul.f32 %v645, %v657
    %v667 = vmul.f32 %v646, %v657
    %v668 = vmul.f32 %v647, %v657
    %v669 = vmul.f32 %v648, %v657
    %v670 = vmul.f32 %v649, %v657
    %v671 = vmul.f32 %v650, %v657
    %v672 = vmul.f32 %v651, %v657
    %v673 = vmul.f32 %v652, %v657
    %v674 = vld [vmem:[%s5 + $0x2] sm:$0x1]
    %v675 = vlaneseq
    %v676 = vshrl.u32 %v675, 7
    %v677 = vsub.s32 0, %v676
    %v678 = vrot.slane %v674, %v677
    %v679 = vadd.f32 %v658, %v678
    %v680 = vadd.f32 %v659, %v678
    %v681 = vadd.f32 %v660, %v678
    %v682 = vadd.f32 %v661, %v678
    %v683 = vadd.f32 %v662, %v678
    %v684 = vadd.f32 %v663, %v678
    %v685 = vadd.f32 %v664, %v678
    %v686 = vadd.f32 %v665, %v678
    %v687 = vadd.f32 %v666, %v678
    %v688 = vadd.f32 %v667, %v678
    %v689 = vadd.f32 %v668, %v678
    %v690 = vadd.f32 %v669, %v678
    %v691 = vadd.f32 %v670, %v678
    %v692 = vadd.f32 %v671, %v678
    %v693 = vadd.f32 %v672, %v678
    %v694 = vadd.f32 %v673, %v678
    %695 = vmatprep.subr.mxu0 0.0
    %696 = vmatpush1.msra.mxu0 %v679
    %697 = vmatprep.subr.mxu0 0.0
    %698 = vmatpush1.msra.mxu0 %v680
    %699 = vmatprep.subr.mxu0 0.0
    %700 = vmatpush1.msra.mxu0 %v681
    %701 = vmatprep.subr.mxu0 0.0
    %702 = vmatpush1.msra.mxu0 %v682
    %703 = vmatprep.subr.mxu0 0.0
    %704 = vmatpush1.msra.mxu0 %v683
    %705 = vmatprep.subr.mxu0 0.0
    %706 = vmatpush1.msra.mxu0 %v684
    %707 = vmatprep.subr.mxu0 0.0
    %708 = vmatpush1.msra.mxu0 %v685
    %709 = vmatprep.subr.mxu0 0.0
    %710 = vmatpush1.msra.mxu0 %v686
    %711 = vmatprep.subr.mxu0 0.0
    %712 = vmatpush1.msra.mxu0 %v687
    %713 = vmatprep.subr.mxu0 0.0
    %714 = vmatpush1.msra.mxu0 %v688
    %715 = vmatprep.subr.mxu0 0.0
    %716 = vmatpush1.msra.mxu0 %v689
    %717 = vmatprep.subr.mxu0 0.0
    %718 = vmatpush1.msra.mxu0 %v690
    %719 = vmatprep.subr.mxu0 0.0
    %720 = vmatpush1.msra.mxu0 %v691
    %721 = vmatprep.subr.mxu0 0.0
    %722 = vmatpush1.msra.mxu0 %v692
    %723 = vmatprep.subr.mxu0 0.0
    %724 = vmatpush1.msra.mxu0 %v693
    %725 = vmatprep.subr.mxu0 0.0
    %726 = vmatpush1.msra.mxu0 %v694
    %727 = vmatprep.subr.mxu0 0.0
    %728 = vmatpush1.msra.mxu0 0.0
    %729 = vmatprep.subr.mxu0 0.0
    %730 = vmatpush1.msra.mxu0 0.0
    %731 = vmatprep.subr.mxu0 0.0
    %732 = vmatpush1.msra.mxu0 0.0
    %733 = vmatprep.subr.mxu0 0.0
    %734 = vmatpush1.msra.mxu0 0.0
    %735 = vmatprep.subr.mxu0 0.0
    %736 = vmatpush1.msra.mxu0 0.0
    %737 = vmatprep.subr.mxu0 0.0
    %738 = vmatpush1.msra.mxu0 0.0
    %739 = vmatprep.subr.mxu0 0.0
    %740 = vmatpush1.msra.mxu0 0.0
    %741 = vmatprep.subr.mxu0 0.0
    %742 = vmatpush1.msra.mxu0 0.0
    %743 = vmatprep.subr.mxu0 0.0
    %744 = vmatpush1.msra.mxu0 0.0
    %745 = vmatprep.subr.mxu0 0.0
    %746 = vmatpush1.msra.mxu0 0.0
    %747 = vmatprep.subr.mxu0 0.0
    %748 = vmatpush1.msra.mxu0 0.0
    %749 = vmatprep.subr.mxu0 0.0
    %750 = vmatpush1.msra.mxu0 0.0
    %751 = vmatprep.subr.mxu0 0.0
    %752 = vmatpush1.msra.mxu0 0.0
    %753 = vmatprep.subr.mxu0 0.0
    %754 = vmatpush1.msra.mxu0 0.0
    %755 = vmatprep.subr.mxu0 0.0
    %756 = vmatpush1.msra.mxu0 0.0
    %757 = vmatprep.subr.mxu0 0.0
    %758 = vmatpush1.msra.mxu0 0.0
    %759 = vmatprep.mubr.f32.mxu0 0.0
    %760 = vmatmul.mubr.f32.gmra.mrb[0].mxu0 %v48
    %v761 = vpop.f32.mrb[0].mxu0
    %v762 = vadd.f32 0.0, %v761
    %v763 = vpop.f32.mrb[0].mxu0
    %764 = vmatprep.mubr.f32.mxu0 0.0
    %765 = vmatmul.mubr.f32.gmra.mrb[0].mxu0 %v49
    %v766 = vpop.f32.mrb[0].mxu0
    %v767 = vadd.f32 0.0, %v766
    %v768 = vpop.f32.mrb[0].mxu0
    %769 = vmatprep.mubr.f32.mxu0 0.0
    %770 = vmatmul.mubr.f32.gmra.mrb[0].mxu0 %v50
    %v771 = vpop.f32.mrb[0].mxu0
    %v772 = vadd.f32 0.0, %v771
    %v773 = vpop.f32.mrb[0].mxu0
    %774 = vmatprep.mubr.f32.mxu0 0.0
    %775 = vmatmul.mubr.f32.gmra.mrb[0].mxu0 %v51
    %v776 = vpop.f32.mrb[0].mxu0
    %v777 = vadd.f32 0.0, %v776
    %v778 = vpop.f32.mrb[0].mxu0
    %779 = vmatprep.mubr.f32.mxu0 0.0
    %780 = vmatmul.mubr.f32.gmra.mrb[0].mxu0 %v52
    %v781 = vpop.f32.mrb[0].mxu0
    %v782 = vadd.f32 0.0, %v781
    %v783 = vpop.f32.mrb[0].mxu0
    %784 = vmatprep.mubr.f32.mxu0 0.0
    %785 = vmatmul.mubr.f32.gmra.mrb[0].mxu0 %v53
    %v786 = vpop.f32.mrb[0].mxu0
    %v787 = vadd.f32 0.0, %v786
    %v788 = vpop.f32.mrb[0].mxu0
    %789 = vmatprep.mubr.f32.mxu0 0.0
    %790 = vmatmul.mubr.f32.gmra.mrb[0].mxu0 %v54
    %v791 = vpop.f32.mrb[0].mxu0
    %v792 = vadd.f32 0.0, %v791
    %v793 = vpop.f32.mrb[0].mxu0
    %794 = vmatprep.mubr.f32.mxu0 0.0
    %795 = vmatmul.mubr.f32.gmra.mrb[0].mxu0 %v55
    %v796 = vpop.f32.mrb[0].mxu0
    %v797 = vadd.f32 0.0, %v796
    %v798 = vpop.f32.mrb[0].mxu0
    %799 = vmatprep.mubr.f32.mxu0 0.0
    %800 = vmatmul.mubr.f32.gmra.mrb[0].mxu0 %v56
    %v801 = vpop.f32.mrb[0].mxu0
    %v802 = vadd.f32 0.0, %v801
    %v803 = vpop.f32.mrb[0].mxu0
    %804 = vmatprep.mubr.f32.mxu0 0.0
    %805 = vmatmul.mubr.f32.gmra.mrb[0].mxu0 %v57
    %v806 = vpop.f32.mrb[0].mxu0
    %v807 = vadd.f32 0.0, %v806
    %v808 = vpop.f32.mrb[0].mxu0
    %809 = vmatprep.mubr.f32.mxu0 0.0
    %810 = vmatmul.mubr.f32.gmra.mrb[0].mxu0 %v58
    %v811 = vpop.f32.mrb[0].mxu0
    %v812 = vadd.f32 0.0, %v811
    %v813 = vpop.f32.mrb[0].mxu0
    %814 = vmatprep.mubr.f32.mxu0 0.0
    %815 = vmatmul.mubr.f32.gmra.mrb[0].mxu0 %v59
    %v816 = vpop.f32.mrb[0].mxu0
    %v817 = vadd.f32 0.0, %v816
    %v818 = vpop.f32.mrb[0].mxu0
    %819 = vmatprep.mubr.f32.mxu0 0.0
    %820 = vmatmul.mubr.f32.gmra.mrb[0].mxu0 %v60
    %v821 = vpop.f32.mrb[0].mxu0
    %v822 = vadd.f32 0.0, %v821
    %v823 = vpop.f32.mrb[0].mxu0
    %824 = vmatprep.mubr.f32.mxu0 0.0
    %825 = vmatmul.mubr.f32.gmra.mrb[0].mxu0 %v61
    %v826 = vpop.f32.mrb[0].mxu0
    %v827 = vadd.f32 0.0, %v826
    %v828 = vpop.f32.mrb[0].mxu0
    %829 = vmatprep.mubr.f32.mxu0 0.0
    %830 = vmatmul.mubr.f32.gmra.mrb[0].mxu0 %v62
    %v831 = vpop.f32.mrb[0].mxu0
    %v832 = vadd.f32 0.0, %v831
    %v833 = vpop.f32.mrb[0].mxu0
    %834 = vmatprep.mubr.f32.mxu0 0.0
    %835 = vmatmul.mubr.f32.gmra.mrb[0].mxu0 %v63
    %v836 = vpop.f32.mrb[0].mxu0
    %v837 = vadd.f32 0.0, %v836
    %v838 = vpop.f32.mrb[0].mxu0
    %839 = vdwg.mxu0
    %v840 = vld [vmem:[%s6] sm:$0xff]
    %v841 = vld [vmem:[%s6 + $0x8] sm:$0xff]
    %v842 = vld [vmem:[%s6 + $0x10] sm:$0xff]
    %v843 = vld [vmem:[%s6 + $0x18] sm:$0xff]
    %v844 = vld [vmem:[%s7] sm:$0xff]
    %v845 = vld [vmem:[%s7 + $0x8] sm:$0xff]
    %v846 = vld [vmem:[%s7 + $0x10] sm:$0xff]
    %v847 = vld [vmem:[%s7 + $0x18] sm:$0xff]
    %vm848 = vcmask 261120
    %v850 = vsel %vm848, %v762, 0
    %v853 = vsel %vm848, %v767, 0
    %v856 = vsel %vm848, %v772, 0
    %v859 = vsel %vm848, %v777, 0
    %v862 = vsel %vm848, %v782, 0
    %v865 = vsel %vm848, %v787, 0
    %v868 = vsel %vm848, %v792, 0
    %v871 = vsel %vm848, %v797, 0
    %v874 = vsel %vm848, %v802, 0
    %v877 = vsel %vm848, %v807, 0
    %v880 = vsel %vm848, %v812, 0
    %v883 = vsel %vm848, %v817, 0
    %v886 = vsel %vm848, %v822, 0
    %v889 = vsel %vm848, %v827, 0
    %v892 = vsel %vm848, %v832, 0
    %v895 = vsel %vm848, %v837, 0
    %897 = vmatprep.subr.mxu0 0.0
    %898 = vmatpush1.msra.mxu0 %v844
    %899 = vmatprep.subr.mxu0 0.0
    %900 = vmatpush1.msra.mxu0 %v845
    %901 = vmatprep.subr.mxu0 0.0
    %902 = vmatpush1.msra.mxu0 %v846
    %903 = vmatprep.subr.mxu0 0.0
    %904 = vmatpush1.msra.mxu0 %v847
    %905 = vmatprep.subr.mxu0 0.0
    %906 = vmatpush1.msra.mxu0 0.0
    %907 = vmatprep.subr.mxu0 0.0
    %908 = vmatpush1.msra.mxu0 0.0
    %909 = vmatprep.subr.mxu0 0.0
    %910 = vmatpush1.msra.mxu0 0.0
    %911 = vmatprep.subr.mxu0 0.0
    %912 = vmatpush1.msra.mxu0 0.0
    %913 = vmatprep.subr.mxu0 0.0
    %914 = vmatpush1.msra.mxu0 0.0
    %915 = vmatprep.subr.mxu0 0.0
    %916 = vmatpush1.msra.mxu0 0.0
    %917 = vmatprep.subr.mxu0 0.0
    %918 = vmatpush1.msra.mxu0 0.0
    %919 = vmatprep.subr.mxu0 0.0
    %920 = vmatpush1.msra.mxu0 0.0
    %921 = vmatprep.subr.mxu0 0.0
    %922 = vmatpush1.msra.mxu0 0.0
    %923 = vmatprep.subr.mxu0 0.0
    %924 = vmatpush1.msra.mxu0 0.0
    %925 = vmatprep.subr.mxu0 0.0
    %926 = vmatpush1.msra.mxu0 0.0
    %927 = vmatprep.subr.mxu0 0.0
    %928 = vmatpush1.msra.mxu0 0.0
    %929 = vmatprep.subr.mxu0 0.0
    %930 = vmatpush1.msra.mxu0 0.0
    %931 = vmatprep.subr.mxu0 0.0
    %932 = vmatpush1.msra.mxu0 0.0
    %933 = vmatprep.subr.mxu0 0.0
    %934 = vmatpush1.msra.mxu0 0.0
    %935 = vmatprep.subr.mxu0 0.0
    %936 = vmatpush1.msra.mxu0 0.0
    %937 = vmatprep.subr.mxu0 0.0
    %938 = vmatpush1.msra.mxu0 0.0
    %939 = vmatprep.subr.mxu0 0.0
    %940 = vmatpush1.msra.mxu0 0.0
    %941 = vmatprep.subr.mxu0 0.0
    %942 = vmatpush1.msra.mxu0 0.0
    %943 = vmatprep.subr.mxu0 0.0
    %944 = vmatpush1.msra.mxu0 0.0
    %945 = vmatprep.subr.mxu0 0.0
    %946 = vmatpush1.msra.mxu0 0.0
    %947 = vmatprep.subr.mxu0 0.0
    %948 = vmatpush1.msra.mxu0 0.0
    %949 = vmatprep.subr.mxu0 0.0
    %950 = vmatpush1.msra.mxu0 0.0
    %951 = vmatprep.subr.mxu0 0.0
    %952 = vmatpush1.msra.mxu0 0.0
    %953 = vmatprep.subr.mxu0 0.0
    %954 = vmatpush1.msra.mxu0 0.0
    %955 = vmatprep.subr.mxu0 0.0
    %956 = vmatpush1.msra.mxu0 0.0
    %957 = vmatprep.subr.mxu0 0.0
    %958 = vmatpush1.msra.mxu0 0.0
    %959 = vmatprep.subr.mxu0 0.0
    %960 = vmatpush1.msra.mxu0 0.0
    %961 = vmatprep.mubr.f32.mxu0 0.0
    %962 = vmatmul.mubr.f32.gmra.mrb[0].mxu0 %v850
    %v963 = vpop.f32.mrb[0].mxu0
    %v964 = vadd.f32 0.0, %v963
    %v965 = vpop.f32.mrb[0].mxu0
    %966 = vmatprep.mubr.f32.mxu0 0.0
    %967 = vmatmul.mubr.f32.gmra.mrb[0].mxu0 %v853
    %v968 = vpop.f32.mrb[0].mxu0
    %v969 = vadd.f32 0.0, %v968
    %v970 = vpop.f32.mrb[0].mxu0
    %971 = vmatprep.mubr.f32.mxu0 0.0
    %972 = vmatmul.mubr.f32.gmra.mrb[0].mxu0 %v856
    %v973 = vpop.f32.mrb[0].mxu0
    %v974 = vadd.f32 0.0, %v973
    %v975 = vpop.f32.mrb[0].mxu0
    %976 = vmatprep.mubr.f32.mxu0 0.0
    %977 = vmatmul.mubr.f32.gmra.mrb[0].mxu0 %v859
    %v978 = vpop.f32.mrb[0].mxu0
    %v979 = vadd.f32 0.0, %v978
    %v980 = vpop.f32.mrb[0].mxu0
    %981 = vmatprep.mubr.f32.mxu0 0.0
    %982 = vmatmul.mubr.f32.gmra.mrb[0].mxu0 %v862
    %v983 = vpop.f32.mrb[0].mxu0
    %v984 = vadd.f32 0.0, %v983
    %v985 = vpop.f32.mrb[0].mxu0
    %986 = vmatprep.mubr.f32.mxu0 0.0
    %987 = vmatmul.mubr.f32.gmra.mrb[0].mxu0 %v865
    %v988 = vpop.f32.mrb[0].mxu0
    %v989 = vadd.f32 0.0, %v988
    %v990 = vpop.f32.mrb[0].mxu0
    %991 = vmatprep.mubr.f32.mxu0 0.0
    %992 = vmatmul.mubr.f32.gmra.mrb[0].mxu0 %v868
    %v993 = vpop.f32.mrb[0].mxu0
    %v994 = vadd.f32 0.0, %v993
    %v995 = vpop.f32.mrb[0].mxu0
    %996 = vmatprep.mubr.f32.mxu0 0.0
    %997 = vmatmul.mubr.f32.gmra.mrb[0].mxu0 %v871
    %v998 = vpop.f32.mrb[0].mxu0
    %v999 = vadd.f32 0.0, %v998
    %v1000 = vpop.f32.mrb[0].mxu0
    %1001 = vmatprep.mubr.f32.mxu0 0.0
    %1002 = vmatmul.mubr.f32.gmra.mrb[0].mxu0 %v874
    %v1003 = vpop.f32.mrb[0].mxu0
    %v1004 = vadd.f32 0.0, %v1003
    %v1005 = vpop.f32.mrb[0].mxu0
    %1006 = vmatprep.mubr.f32.mxu0 0.0
    %1007 = vmatmul.mubr.f32.gmra.mrb[0].mxu0 %v877
    %v1008 = vpop.f32.mrb[0].mxu0
    %v1009 = vadd.f32 0.0, %v1008
    %v1010 = vpop.f32.mrb[0].mxu0
    %1011 = vmatprep.mubr.f32.mxu0 0.0
    %1012 = vmatmul.mubr.f32.gmra.mrb[0].mxu0 %v880
    %v1013 = vpop.f32.mrb[0].mxu0
    %v1014 = vadd.f32 0.0, %v1013
    %v1015 = vpop.f32.mrb[0].mxu0
    %1016 = vmatprep.mubr.f32.mxu0 0.0
    %1017 = vmatmul.mubr.f32.gmra.mrb[0].mxu0 %v883
    %v1018 = vpop.f32.mrb[0].mxu0
    %v1019 = vadd.f32 0.0, %v1018
    %v1020 = vpop.f32.mrb[0].mxu0
    %1021 = vmatprep.mubr.f32.mxu0 0.0
    %1022 = vmatmul.mubr.f32.gmra.mrb[0].mxu0 %v886
    %v1023 = vpop.f32.mrb[0].mxu0
    %v1024 = vadd.f32 0.0, %v1023
    %v1025 = vpop.f32.mrb[0].mxu0
    %1026 = vmatprep.mubr.f32.mxu0 0.0
    %1027 = vmatmul.mubr.f32.gmra.mrb[0].mxu0 %v889
    %v1028 = vpop.f32.mrb[0].mxu0
    %v1029 = vadd.f32 0.0, %v1028
    %v1030 = vpop.f32.mrb[0].mxu0
    %1031 = vmatprep.mubr.f32.mxu0 0.0
    %1032 = vmatmul.mubr.f32.gmra.mrb[0].mxu0 %v892
    %v1033 = vpop.f32.mrb[0].mxu0
    %v1034 = vadd.f32 0.0, %v1033
    %v1035 = vpop.f32.mrb[0].mxu0
    %1036 = vmatprep.mubr.f32.mxu0 0.0
    %1037 = vmatmul.mubr.f32.gmra.mrb[0].mxu0 %v895
    %v1038 = vpop.f32.mrb[0].mxu0
    %v1039 = vadd.f32 0.0, %v1038
    %v1040 = vpop.f32.mrb[0].mxu0
    %1041 = vdwg.mxu0
    %v1043 = vsel %vm848, %v679, 0
    %v1046 = vsel %vm848, %v680, 0
    %v1049 = vsel %vm848, %v681, 0
    %v1052 = vsel %vm848, %v682, 0
    %v1055 = vsel %vm848, %v683, 0
    %v1058 = vsel %vm848, %v684, 0
    %v1061 = vsel %vm848, %v685, 0
    %v1064 = vsel %vm848, %v686, 0
    %v1067 = vsel %vm848, %v687, 0
    %v1070 = vsel %vm848, %v688, 0
    %v1073 = vsel %vm848, %v689, 0
    %v1076 = vsel %vm848, %v690, 0
    %v1079 = vsel %vm848, %v691, 0
    %v1082 = vsel %vm848, %v692, 0
    %v1085 = vsel %vm848, %v693, 0
    %v1088 = vsel %vm848, %v694, 0
    %1090 = vmatprep.subr.mxu0 0.0
    %1091 = vmatpush1.msra.mxu0 %v840
    %1092 = vmatprep.subr.mxu0 0.0
    %1093 = vmatpush1.msra.mxu0 %v841
    %1094 = vmatprep.subr.mxu0 0.0
    %1095 = vmatpush1.msra.mxu0 %v842
    %1096 = vmatprep.subr.mxu0 0.0
    %1097 = vmatpush1.msra.mxu0 %v843
    %1098 = vmatprep.subr.mxu0 0.0
    %1099 = vmatpush1.msra.mxu0 0.0
    %1100 = vmatprep.subr.mxu0 0.0
    %1101 = vmatpush1.msra.mxu0 0.0
    %1102 = vmatprep.subr.mxu0 0.0
    %1103 = vmatpush1.msra.mxu0 0.0
    %1104 = vmatprep.subr.mxu0 0.0
    %1105 = vmatpush1.msra.mxu0 0.0
    %1106 = vmatprep.subr.mxu0 0.0
    %1107 = vmatpush1.msra.mxu0 0.0
    %1108 = vmatprep.subr.mxu0 0.0
    %1109 = vmatpush1.msra.mxu0 0.0
    %1110 = vmatprep.subr.mxu0 0.0
    %1111 = vmatpush1.msra.mxu0 0.0
    %1112 = vmatprep.subr.mxu0 0.0
    %1113 = vmatpush1.msra.mxu0 0.0
    %1114 = vmatprep.subr.mxu0 0.0
    %1115 = vmatpush1.msra.mxu0 0.0
    %1116 = vmatprep.subr.mxu0 0.0
    %1117 = vmatpush1.msra.mxu0 0.0
    %1118 = vmatprep.subr.mxu0 0.0
    %1119 = vmatpush1.msra.mxu0 0.0
    %1120 = vmatprep.subr.mxu0 0.0
    %1121 = vmatpush1.msra.mxu0 0.0
    %1122 = vmatprep.subr.mxu0 0.0
    %1123 = vmatpush1.msra.mxu0 0.0
    %1124 = vmatprep.subr.mxu0 0.0
    %1125 = vmatpush1.msra.mxu0 0.0
    %1126 = vmatprep.subr.mxu0 0.0
    %1127 = vmatpush1.msra.mxu0 0.0
    %1128 = vmatprep.subr.mxu0 0.0
    %1129 = vmatpush1.msra.mxu0 0.0
    %1130 = vmatprep.subr.mxu0 0.0
    %1131 = vmatpush1.msra.mxu0 0.0
    %1132 = vmatprep.subr.mxu0 0.0
    %1133 = vmatpush1.msra.mxu0 0.0
    %1134 = vmatprep.subr.mxu0 0.0
    %1135 = vmatpush1.msra.mxu0 0.0
    %1136 = vmatprep.subr.mxu0 0.0
    %1137 = vmatpush1.msra.mxu0 0.0
    %1138 = vmatprep.subr.mxu0 0.0
    %1139 = vmatpush1.msra.mxu0 0.0
    %1140 = vmatprep.subr.mxu0 0.0
    %1141 = vmatpush1.msra.mxu0 0.0
    %1142 = vmatprep.subr.mxu0 0.0
    %1143 = vmatpush1.msra.mxu0 0.0
    %1144 = vmatprep.subr.mxu0 0.0
    %1145 = vmatpush1.msra.mxu0 0.0
    %1146 = vmatprep.subr.mxu0 0.0
    %1147 = vmatpush1.msra.mxu0 0.0
    %1148 = vmatprep.subr.mxu0 0.0
    %1149 = vmatpush1.msra.mxu0 0.0
    %1150 = vmatprep.subr.mxu0 0.0
    %1151 = vmatpush1.msra.mxu0 0.0
    %1152 = vmatprep.subr.mxu0 0.0
    %1153 = vmatpush1.msra.mxu0 0.0
    %1154 = vmatprep.mubr.f32.mxu0 0.0
    %1155 = vmatmul.mubr.f32.gmra.mrb[0].mxu0 %v1043
    %v1156 = vpop.f32.mrb[0].mxu0
    %v1157 = vadd.f32 %v964, %v1156
    %v1158 = vpop.f32.mrb[0].mxu0
    %1159 = vmatprep.mubr.f32.mxu0 0.0
    %1160 = vmatmul.mubr.f32.gmra.mrb[0].mxu0 %v1046
    %v1161 = vpop.f32.mrb[0].mxu0
    %v1162 = vadd.f32 %v969, %v1161
    %v1163 = vpop.f32.mrb[0].mxu0
    %1164 = vmatprep.mubr.f32.mxu0 0.0
    %1165 = vmatmul.mubr.f32.gmra.mrb[0].mxu0 %v1049
    %v1166 = vpop.f32.mrb[0].mxu0
    %v1167 = vadd.f32 %v974, %v1166
    %v1168 = vpop.f32.mrb[0].mxu0
    %1169 = vmatprep.mubr.f32.mxu0 0.0
    %1170 = vmatmul.mubr.f32.gmra.mrb[0].mxu0 %v1052
    %v1171 = vpop.f32.mrb[0].mxu0
    %v1172 = vadd.f32 %v979, %v1171
    %v1173 = vpop.f32.mrb[0].mxu0
    %1174 = vmatprep.mubr.f32.mxu0 0.0
    %1175 = vmatmul.mubr.f32.gmra.mrb[0].mxu0 %v1055
    %v1176 = vpop.f32.mrb[0].mxu0
    %v1177 = vadd.f32 %v984, %v1176
    %v1178 = vpop.f32.mrb[0].mxu0
    %1179 = vmatprep.mubr.f32.mxu0 0.0
    %1180 = vmatmul.mubr.f32.gmra.mrb[0].mxu0 %v1058
    %v1181 = vpop.f32.mrb[0].mxu0
    %v1182 = vadd.f32 %v989, %v1181
    %v1183 = vpop.f32.mrb[0].mxu0
    %1184 = vmatprep.mubr.f32.mxu0 0.0
    %1185 = vmatmul.mubr.f32.gmra.mrb[0].mxu0 %v1061
    %v1186 = vpop.f32.mrb[0].mxu0
    %v1187 = vadd.f32 %v994, %v1186
    %v1188 = vpop.f32.mrb[0].mxu0
    %1189 = vmatprep.mubr.f32.mxu0 0.0
    %1190 = vmatmul.mubr.f32.gmra.mrb[0].mxu0 %v1064
    %v1191 = vpop.f32.mrb[0].mxu0
    %v1192 = vadd.f32 %v999, %v1191
    %v1193 = vpop.f32.mrb[0].mxu0
    %1194 = vmatprep.mubr.f32.mxu0 0.0
    %1195 = vmatmul.mubr.f32.gmra.mrb[0].mxu0 %v1067
    %v1196 = vpop.f32.mrb[0].mxu0
    %v1197 = vadd.f32 %v1004, %v1196
    %v1198 = vpop.f32.mrb[0].mxu0
    %1199 = vmatprep.mubr.f32.mxu0 0.0
    %1200 = vmatmul.mubr.f32.gmra.mrb[0].mxu0 %v1070
    %v1201 = vpop.f32.mrb[0].mxu0
    %v1202 = vadd.f32 %v1009, %v1201
    %v1203 = vpop.f32.mrb[0].mxu0
    %1204 = vmatprep.mubr.f32.mxu0 0.0
    %1205 = vmatmul.mubr.f32.gmra.mrb[0].mxu0 %v1073
    %v1206 = vpop.f32.mrb[0].mxu0
    %v1207 = vadd.f32 %v1014, %v1206
    %v1208 = vpop.f32.mrb[0].mxu0
    %1209 = vmatprep.mubr.f32.mxu0 0.0
    %1210 = vmatmul.mubr.f32.gmra.mrb[0].mxu0 %v1076
    %v1211 = vpop.f32.mrb[0].mxu0
    %v1212 = vadd.f32 %v1019, %v1211
    %v1213 = vpop.f32.mrb[0].mxu0
    %1214 = vmatprep.mubr.f32.mxu0 0.0
    %1215 = vmatmul.mubr.f32.gmra.mrb[0].mxu0 %v1079
    %v1216 = vpop.f32.mrb[0].mxu0
    %v1217 = vadd.f32 %v1024, %v1216
    %v1218 = vpop.f32.mrb[0].mxu0
    %1219 = vmatprep.mubr.f32.mxu0 0.0
    %1220 = vmatmul.mubr.f32.gmra.mrb[0].mxu0 %v1082
    %v1221 = vpop.f32.mrb[0].mxu0
    %v1222 = vadd.f32 %v1029, %v1221
    %v1223 = vpop.f32.mrb[0].mxu0
    %1224 = vmatprep.mubr.f32.mxu0 0.0
    %1225 = vmatmul.mubr.f32.gmra.mrb[0].mxu0 %v1085
    %v1226 = vpop.f32.mrb[0].mxu0
    %v1227 = vadd.f32 %v1034, %v1226
    %v1228 = vpop.f32.mrb[0].mxu0
    %1229 = vmatprep.mubr.f32.mxu0 0.0
    %1230 = vmatmul.mubr.f32.gmra.mrb[0].mxu0 %v1088
    %v1231 = vpop.f32.mrb[0].mxu0
    %v1232 = vadd.f32 %v1039, %v1231
    %v1233 = vpop.f32.mrb[0].mxu0
    %1234 = vdwg.mxu0
    %v1235 = vld [vmem:[%s8] sm:$0x1]
    %v1236 = vlaneseq
    %v1237 = vshrl.u32 %v1236, 7
    %v1238 = vsub.s32 0, %v1237
    %v1239 = vrot.slane %v1235, %v1238
    %v1240 = vadd.f32 %v1157, %v1239
    %v1241 = vadd.f32 %v1162, %v1239
    %v1242 = vadd.f32 %v1167, %v1239
    %v1243 = vadd.f32 %v1172, %v1239
    %v1244 = vadd.f32 %v1177, %v1239
    %v1245 = vadd.f32 %v1182, %v1239
    %v1246 = vadd.f32 %v1187, %v1239
    %v1247 = vadd.f32 %v1192, %v1239
    %v1248 = vadd.f32 %v1197, %v1239
    %v1249 = vadd.f32 %v1202, %v1239
    %v1250 = vadd.f32 %v1207, %v1239
    %v1251 = vadd.f32 %v1212, %v1239
    %v1252 = vadd.f32 %v1217, %v1239
    %v1253 = vadd.f32 %v1222, %v1239
    %v1254 = vadd.f32 %v1227, %v1239
    %v1255 = vadd.f32 %v1232, %v1239
    %v1256 = vmax.f32 %v1240, 0.0
    %v1257 = vmax.f32 %v1241, 0.0
    %v1258 = vmax.f32 %v1242, 0.0
    %v1259 = vmax.f32 %v1243, 0.0
    %v1260 = vmax.f32 %v1244, 0.0
    %v1261 = vmax.f32 %v1245, 0.0
    %v1262 = vmax.f32 %v1246, 0.0
    %v1263 = vmax.f32 %v1247, 0.0
    %v1264 = vmax.f32 %v1248, 0.0
    %v1265 = vmax.f32 %v1249, 0.0
    %v1266 = vmax.f32 %v1250, 0.0
    %v1267 = vmax.f32 %v1251, 0.0
    %v1268 = vmax.f32 %v1252, 0.0
    %v1269 = vmax.f32 %v1253, 0.0
    %v1270 = vmax.f32 %v1254, 0.0
    %v1271 = vmax.f32 %v1255, 0.0
    %v1272 = vld [vmem:[%s8 + $0x1] sm:$0x1]
    %v1273 = vlaneseq
    %v1274 = vshrl.u32 %v1273, 7
    %v1275 = vsub.s32 0, %v1274
    %v1276 = vrot.slane %v1272, %v1275
    %v1277 = vmul.f32 %v1256, %v1276
    %v1278 = vmul.f32 %v1257, %v1276
    %v1279 = vmul.f32 %v1258, %v1276
    %v1280 = vmul.f32 %v1259, %v1276
    %v1281 = vmul.f32 %v1260, %v1276
    %v1282 = vmul.f32 %v1261, %v1276
    %v1283 = vmul.f32 %v1262, %v1276
    %v1284 = vmul.f32 %v1263, %v1276
    %v1285 = vmul.f32 %v1264, %v1276
    %v1286 = vmul.f32 %v1265, %v1276
    %v1287 = vmul.f32 %v1266, %v1276
    %v1288 = vmul.f32 %v1267, %v1276
    %v1289 = vmul.f32 %v1268, %v1276
    %v1290 = vmul.f32 %v1269, %v1276
    %v1291 = vmul.f32 %v1270, %v1276
    %v1292 = vmul.f32 %v1271, %v1276
    %v1293 = vld [vmem:[%s8 + $0x2] sm:$0x1]
    %v1294 = vlaneseq
    %v1295 = vshrl.u32 %v1294, 7
    %v1296 = vsub.s32 0, %v1295
    %v1297 = vrot.slane %v1293, %v1296
    %v1298 = vadd.f32 %v1277, %v1297
    %v1299 = vadd.f32 %v1278, %v1297
    %v1300 = vadd.f32 %v1279, %v1297
    %v1301 = vadd.f32 %v1280, %v1297
    %v1302 = vadd.f32 %v1281, %v1297
    %v1303 = vadd.f32 %v1282, %v1297
    %v1304 = vadd.f32 %v1283, %v1297
    %v1305 = vadd.f32 %v1284, %v1297
    %v1306 = vadd.f32 %v1285, %v1297
    %v1307 = vadd.f32 %v1286, %v1297
    %v1308 = vadd.f32 %v1287, %v1297
    %v1309 = vadd.f32 %v1288, %v1297
    %v1310 = vadd.f32 %v1289, %v1297
    %v1311 = vadd.f32 %v1290, %v1297
    %v1312 = vadd.f32 %v1291, %v1297
    %v1313 = vadd.f32 %v1292, %v1297
    %1314 = vst.msk [vmem:[#allocation3] sm:$0xff] %vm848, %v679
    %1315 = vst.msk [vmem:[#allocation3 + $0x8] sm:$0xff] %vm848, %v680
    %1316 = vst.msk [vmem:[#allocation3 + $0x10] sm:$0xff] %vm848, %v681
    %1317 = vst.msk [vmem:[#allocation3 + $0x18] sm:$0xff] %vm848, %v682
    %1318 = vst.msk [vmem:[#allocation3 + $0x20] sm:$0xff] %vm848, %v683
    %1319 = vst.msk [vmem:[#allocation3 + $0x28] sm:$0xff] %vm848, %v684
    %1320 = vst.msk [vmem:[#allocation3 + $0x30] sm:$0xff] %vm848, %v685
    %1321 = vst.msk [vmem:[#allocation3 + $0x38] sm:$0xff] %vm848, %v686
    %1322 = vst.msk [vmem:[#allocation3 + $0x40] sm:$0xff] %vm848, %v687
    %1323 = vst.msk [vmem:[#allocation3 + $0x48] sm:$0xff] %vm848, %v688
    %1324 = vst.msk [vmem:[#allocation3 + $0x50] sm:$0xff] %vm848, %v689
    %1325 = vst.msk [vmem:[#allocation3 + $0x58] sm:$0xff] %vm848, %v690
    %1326 = vst.msk [vmem:[#allocation3 + $0x60] sm:$0xff] %vm848, %v691
    %1327 = vst.msk [vmem:[#allocation3 + $0x68] sm:$0xff] %vm848, %v692
    %1328 = vst.msk [vmem:[#allocation3 + $0x70] sm:$0xff] %vm848, %v693
    %1329 = vst.msk [vmem:[#allocation3 + $0x78] sm:$0xff] %vm848, %v694
    %1346 = vrot.lane.b32.xlu0 %v1298, 32
    %v1347 = vpop.permute.xlu0 %1346
    %1348 = vrot.lane.b32.xlu0 %v1299, 32
    %v1349 = vpop.permute.xlu0 %1348
    %1350 = vrot.lane.b32.xlu0 %v1300, 32
    %v1351 = vpop.permute.xlu0 %1350
    %1352 = vrot.lane.b32.xlu0 %v1301, 32
    %v1353 = vpop.permute.xlu0 %1352
    %1354 = vrot.lane.b32.xlu0 %v1302, 32
    %v1355 = vpop.permute.xlu0 %1354
    %1356 = vrot.lane.b32.xlu0 %v1303, 32
    %v1357 = vpop.permute.xlu0 %1356
    %1358 = vrot.lane.b32.xlu0 %v1304, 32
    %v1359 = vpop.permute.xlu0 %1358
    %1360 = vrot.lane.b32.xlu0 %v1305, 32
    %v1361 = vpop.permute.xlu0 %1360
    %1362 = vrot.lane.b32.xlu0 %v1306, 32
    %v1363 = vpop.permute.xlu0 %1362
    %1364 = vrot.lane.b32.xlu0 %v1307, 32
    %v1365 = vpop.permute.xlu0 %1364
    %1366 = vrot.lane.b32.xlu0 %v1308, 32
    %v1367 = vpop.permute.xlu0 %1366
    %1368 = vrot.lane.b32.xlu0 %v1309, 32
    %v1369 = vpop.permute.xlu0 %1368
    %1370 = vrot.lane.b32.xlu0 %v1310, 32
    %v1371 = vpop.permute.xlu0 %1370
    %1372 = vrot.lane.b32.xlu0 %v1311, 32
    %v1373 = vpop.permute.xlu0 %1372
    %1374 = vrot.lane.b32.xlu0 %v1312, 32
    %v1375 = vpop.permute.xlu0 %1374
    %1376 = vrot.lane.b32.xlu0 %v1313, 32
    %v1377 = vpop.permute.xlu0 %1376
    %vm1394 = vcmask 523520
    %1395 = vst.msk [vmem:[#allocation3] sm:$0xff] %vm1394, %v1347
    %1396 = vst.msk [vmem:[#allocation3 + $0x8] sm:$0xff] %vm1394, %v1349
    %1397 = vst.msk [vmem:[#allocation3 + $0x10] sm:$0xff] %vm1394, %v1351
    %1398 = vst.msk [vmem:[#allocation3 + $0x18] sm:$0xff] %vm1394, %v1353
    %1399 = vst.msk [vmem:[#allocation3 + $0x20] sm:$0xff] %vm1394, %v1355
    %1400 = vst.msk [vmem:[#allocation3 + $0x28] sm:$0xff] %vm1394, %v1357
    %1401 = vst.msk [vmem:[#allocation3 + $0x30] sm:$0xff] %vm1394, %v1359
    %1402 = vst.msk [vmem:[#allocation3 + $0x38] sm:$0xff] %vm1394, %v1361
    %1403 = vst.msk [vmem:[#allocation3 + $0x40] sm:$0xff] %vm1394, %v1363
    %1404 = vst.msk [vmem:[#allocation3 + $0x48] sm:$0xff] %vm1394, %v1365
    %1405 = vst.msk [vmem:[#allocation3 + $0x50] sm:$0xff] %vm1394, %v1367
    %1406 = vst.msk [vmem:[#allocation3 + $0x58] sm:$0xff] %vm1394, %v1369
    %1407 = vst.msk [vmem:[#allocation3 + $0x60] sm:$0xff] %vm1394, %v1371
    %1408 = vst.msk [vmem:[#allocation3 + $0x68] sm:$0xff] %vm1394, %v1373
    %1409 = vst.msk [vmem:[#allocation3 + $0x70] sm:$0xff] %vm1394, %v1375
    %1410 = vst.msk [vmem:[#allocation3 + $0x78] sm:$0xff] %vm1394, %v1377
    %v1411 = vld [vmem:[%s9] sm:$0x1]
    %v1412 = vld [vmem:[%s10] sm:$0x1]
    %v1414 = vsel %vm848, %v1412, 0
    %1416 = vmatprep.subr.mxu0 0.0
    %1417 = vmatpush1.xpose.msra.mxu0 %v1043
    %1418 = vmatprep.subr.mxu0 0.0
    %1419 = vmatpush1.xpose.msra.mxu0 %v1046
    %1420 = vmatprep.subr.mxu0 0.0
    %1421 = vmatpush1.xpose.msra.mxu0 %v1049
    %1422 = vmatprep.subr.mxu0 0.0
    %1423 = vmatpush1.xpose.msra.mxu0 %v1052
    %1424 = vmatprep.subr.mxu0 0.0
    %1425 = vmatpush1.xpose.msra.mxu0 %v1055
    %1426 = vmatprep.subr.mxu0 0.0
    %1427 = vmatpush1.xpose.msra.mxu0 %v1058
    %1428 = vmatprep.subr.mxu0 0.0
    %1429 = vmatpush1.xpose.msra.mxu0 %v1061
    %1430 = vmatprep.subr.mxu0 0.0
    %1431 = vmatpush1.xpose.msra.mxu0 %v1064
    %1432 = vmatprep.subr.mxu0 0.0
    %1433 = vmatpush1.xpose.msra.mxu0 %v1067
    %1434 = vmatprep.subr.mxu0 0.0
    %1435 = vmatpush1.xpose.msra.mxu0 %v1070
    %1436 = vmatprep.subr.mxu0 0.0
    %1437 = vmatpush1.xpose.msra.mxu0 %v1073
    %1438 = vmatprep.subr.mxu0 0.0
    %1439 = vmatpush1.xpose.msra.mxu0 %v1076
    %1440 = vmatprep.subr.mxu0 0.0
    %1441 = vmatpush1.xpose.msra.mxu0 %v1079
    %1442 = vmatprep.subr.mxu0 0.0
    %1443 = vmatpush1.xpose.msra.mxu0 %v1082
    %1444 = vmatprep.subr.mxu0 0.0
    %1445 = vmatpush1.xpose.msra.mxu0 %v1085
    %1446 = vmatprep.subr.mxu0 0.0
    %1447 = vmatpush1.xpose.msra.mxu0 %v1088
    %1448 = vmatprep.subr.mxu0 0.0
    %1449 = vmatpush1.xpose.msra.mxu0 0.0
    %1450 = vmatprep.subr.mxu0 0.0
    %1451 = vmatpush1.xpose.msra.mxu0 0.0
    %1452 = vmatprep.subr.mxu0 0.0
    %1453 = vmatpush1.xpose.msra.mxu0 0.0
    %1454 = vmatprep.subr.mxu0 0.0
    %1455 = vmatpush1.xpose.msra.mxu0 0.0
    %1456 = vmatprep.subr.mxu0 0.0
    %1457 = vmatpush1.xpose.msra.mxu0 0.0
    %1458 = vmatprep.subr.mxu0 0.0
    %1459 = vmatpush1.xpose.msra.mxu0 0.0
    %1460 = vmatprep.subr.mxu0 0.0
    %1461 = vmatpush1.xpose.msra.mxu0 0.0
    %1462 = vmatprep.subr.mxu0 0.0
    %1463 = vmatpush1.xpose.msra.mxu0 0.0
    %1464 = vmatprep.subr.mxu0 0.0
    %1465 = vmatpush1.xpose.msra.mxu0 0.0
    %1466 = vmatprep.subr.mxu0 0.0
    %1467 = vmatpush1.xpose.msra.mxu0 0.0
    %1468 = vmatprep.subr.mxu0 0.0
    %1469 = vmatpush1.xpose.msra.mxu0 0.0
    %1470 = vmatprep.subr.mxu0 0.0
    %1471 = vmatpush1.xpose.msra.mxu0 0.0
    %1472 = vmatprep.subr.mxu0 0.0
    %1473 = vmatpush1.xpose.msra.mxu0 0.0
    %1474 = vmatprep.subr.mxu0 0.0
    %1475 = vmatpush1.xpose.msra.mxu0 0.0
    %1476 = vmatprep.subr.mxu0 0.0
    %1477 = vmatpush1.xpose.msra.mxu0 0.0
    %1478 = vmatprep.subr.mxu0 0.0
    %1479 = vmatpush1.xpose.msra.mxu0 0.0
    %1480 = vmatprep.mubr.f32.mxu0 0.0
    %1481 = vmatmul.mubr.f32.gmra.mrb[0].mxu0 %v1414
    %v1482 = vpop.f32.mrb[0].mxu0
    %v1483 = vadd.f32 0.0, %v1482
    %v1484 = vpop.f32.mrb[0].mxu0
    %1485 = vdwg.mxu0
    %v1487 = vsel %vm229, %v1411, 0
    %1489 = vmatprep.subr.mxu0 0.0
    %1490 = vmatpush1.xpose.msra.mxu0 %v424
    %1491 = vmatprep.subr.mxu0 0.0
    %1492 = vmatpush1.xpose.msra.mxu0 %v427
    %1493 = vmatprep.subr.mxu0 0.0
    %1494 = vmatpush1.xpose.msra.mxu0 %v430
    %1495 = vmatprep.subr.mxu0 0.0
    %1496 = vmatpush1.xpose.msra.mxu0 %v433
    %1497 = vmatprep.subr.mxu0 0.0
    %1498 = vmatpush1.xpose.msra.mxu0 %v436
    %1499 = vmatprep.subr.mxu0 0.0
    %1500 = vmatpush1.xpose.msra.mxu0 %v439
    %1501 = vmatprep.subr.mxu0 0.0
    %1502 = vmatpush1.xpose.msra.mxu0 %v442
    %1503 = vmatprep.subr.mxu0 0.0
    %1504 = vmatpush1.xpose.msra.mxu0 %v445
    %1505 = vmatprep.subr.mxu0 0.0
    %1506 = vmatpush1.xpose.msra.mxu0 %v448
    %1507 = vmatprep.subr.mxu0 0.0
    %1508 = vmatpush1.xpose.msra.mxu0 %v451
    %1509 = vmatprep.subr.mxu0 0.0
    %1510 = vmatpush1.xpose.msra.mxu0 %v454
    %1511 = vmatprep.subr.mxu0 0.0
    %1512 = vmatpush1.xpose.msra.mxu0 %v457
    %1513 = vmatprep.subr.mxu0 0.0
    %1514 = vmatpush1.xpose.msra.mxu0 %v460
    %1515 = vmatprep.subr.mxu0 0.0
    %1516 = vmatpush1.xpose.msra.mxu0 %v463
    %1517 = vmatprep.subr.mxu0 0.0
    %1518 = vmatpush1.xpose.msra.mxu0 %v466
    %1519 = vmatprep.subr.mxu0 0.0
    %1520 = vmatpush1.xpose.msra.mxu0 %v469
    %1521 = vmatprep.subr.mxu0 0.0
    %1522 = vmatpush1.xpose.msra.mxu0 0.0
    %1523 = vmatprep.subr.mxu0 0.0
    %1524 = vmatpush1.xpose.msra.mxu0 0.0
    %1525 = vmatprep.subr.mxu0 0.0
    %1526 = vmatpush1.xpose.msra.mxu0 0.0
    %1527 = vmatprep.subr.mxu0 0.0
    %1528 = vmatpush1.xpose.msra.mxu0 0.0
    %1529 = vmatprep.subr.mxu0 0.0
    %1530 = vmatpush1.xpose.msra.mxu0 0.0
    %1531 = vmatprep.subr.mxu0 0.0
    %1532 = vmatpush1.xpose.msra.mxu0 0.0
    %1533 = vmatprep.subr.mxu0 0.0
    %1534 = vmatpush1.xpose.msra.mxu0 0.0
    %1535 = vmatprep.subr.mxu0 0.0
    %1536 = vmatpush1.xpose.msra.mxu0 0.0
    %1537 = vmatprep.subr.mxu0 0.0
    %1538 = vmatpush1.xpose.msra.mxu0 0.0
    %1539 = vmatprep.subr.mxu0 0.0
    %1540 = vmatpush1.xpose.msra.mxu0 0.0
    %1541 = vmatprep.subr.mxu0 0.0
    %1542 = vmatpush1.xpose.msra.mxu0 0.0
    %1543 = vmatprep.subr.mxu0 0.0
    %1544 = vmatpush1.xpose.msra.mxu0 0.0
    %1545 = vmatprep.subr.mxu0 0.0
    %1546 = vmatpush1.xpose.msra.mxu0 0.0
    %1547 = vmatprep.subr.mxu0 0.0
    %1548 = vmatpush1.xpose.msra.mxu0 0.0
    %1549 = vmatprep.subr.mxu0 0.0
    %1550 = vmatpush1.xpose.msra.mxu0 0.0
    %1551 = vmatprep.subr.mxu0 0.0
    %1552 = vmatpush1.xpose.msra.mxu0 0.0
    %1553 = vmatprep.mubr.f32.mxu0 0.0
    %1554 = vmatmul.mubr.f32.gmra.mrb[0].mxu0 %v1487
    %v1555 = vpop.f32.mrb[0].mxu0
    %v1556 = vadd.f32 %v1483, %v1555
    %v1557 = vpop.f32.mrb[0].mxu0
    %1558 = vdwg.mxu0
    %v1559 = vld [vmem:[%s11] sm:$0x1]
    %v1561 = vsel %vm848, %v1559, 0
    %v1563 = vsel %vm848, %v1298, 0
    %v1565 = vsel %vm848, %v1299, 0
    %v1567 = vsel %vm848, %v1300, 0
    %v1569 = vsel %vm848, %v1301, 0
    %v1571 = vsel %vm848, %v1302, 0
    %v1573 = vsel %vm848, %v1303, 0
    %v1575 = vsel %vm848, %v1304, 0
    %v1577 = vsel %vm848, %v1305, 0
    %v1579 = vsel %vm848, %v1306, 0
    %v1581 = vsel %vm848, %v1307, 0
    %v1583 = vsel %vm848, %v1308, 0
    %v1585 = vsel %vm848, %v1309, 0
    %v1587 = vsel %vm848, %v1310, 0
    %v1589 = vsel %vm848, %v1311, 0
    %v1591 = vsel %vm848, %v1312, 0
    %v1593 = vsel %vm848, %v1313, 0
    %1595 = vmatprep.subr.mxu0 0.0
    %1596 = vmatpush1.xpose.msra.mxu0 %v1563
    %1597 = vmatprep.subr.mxu0 0.0
    %1598 = vmatpush1.xpose.msra.mxu0 %v1565
    %1599 = vmatprep.subr.mxu0 0.0
    %1600 = vmatpush1.xpose.msra.mxu0 %v1567
    %1601 = vmatprep.subr.mxu0 0.0
    %1602 = vmatpush1.xpose.msra.mxu0 %v1569
    %1603 = vmatprep.subr.mxu0 0.0
    %1604 = vmatpush1.xpose.msra.mxu0 %v1571
    %1605 = vmatprep.subr.mxu0 0.0
    %1606 = vmatpush1.xpose.msra.mxu0 %v1573
    %1607 = vmatprep.subr.mxu0 0.0
    %1608 = vmatpush1.xpose.msra.mxu0 %v1575
    %1609 = vmatprep.subr.mxu0 0.0
    %1610 = vmatpush1.xpose.msra.mxu0 %v1577
    %1611 = vmatprep.subr.mxu0 0.0
    %1612 = vmatpush1.xpose.msra.mxu0 %v1579
    %1613 = vmatprep.subr.mxu0 0.0
    %1614 = vmatpush1.xpose.msra.mxu0 %v1581
    %1615 = vmatprep.subr.mxu0 0.0
    %1616 = vmatpush1.xpose.msra.mxu0 %v1583
    %1617 = vmatprep.subr.mxu0 0.0
    %1618 = vmatpush1.xpose.msra.mxu0 %v1585
    %1619 = vmatprep.subr.mxu0 0.0
    %1620 = vmatpush1.xpose.msra.mxu0 %v1587
    %1621 = vmatprep.subr.mxu0 0.0
    %1622 = vmatpush1.xpose.msra.mxu0 %v1589
    %1623 = vmatprep.subr.mxu0 0.0
    %1624 = vmatpush1.xpose.msra.mxu0 %v1591
    %1625 = vmatprep.subr.mxu0 0.0
    %1626 = vmatpush1.xpose.msra.mxu0 %v1593
    %1627 = vmatprep.subr.mxu0 0.0
    %1628 = vmatpush1.xpose.msra.mxu0 0.0
    %1629 = vmatprep.subr.mxu0 0.0
    %1630 = vmatpush1.xpose.msra.mxu0 0.0
    %1631 = vmatprep.subr.mxu0 0.0
    %1632 = vmatpush1.xpose.msra.mxu0 0.0
    %1633 = vmatprep.subr.mxu0 0.0
    %1634 = vmatpush1.xpose.msra.mxu0 0.0
    %1635 = vmatprep.subr.mxu0 0.0
    %1636 = vmatpush1.xpose.msra.mxu0 0.0
    %1637 = vmatprep.subr.mxu0 0.0
    %1638 = vmatpush1.xpose.msra.mxu0 0.0
    %1639 = vmatprep.subr.mxu0 0.0
    %1640 = vmatpush1.xpose.msra.mxu0 0.0
    %1641 = vmatprep.subr.mxu0 0.0
    %1642 = vmatpush1.xpose.msra.mxu0 0.0
    %1643 = vmatprep.subr.mxu0 0.0
    %1644 = vmatpush1.xpose.msra.mxu0 0.0
    %1645 = vmatprep.subr.mxu0 0.0
    %1646 = vmatpush1.xpose.msra.mxu0 0.0
    %1647 = vmatprep.subr.mxu0 0.0
    %1648 = vmatpush1.xpose.msra.mxu0 0.0
    %1649 = vmatprep.subr.mxu0 0.0
    %1650 = vmatpush1.xpose.msra.mxu0 0.0
    %1651 = vmatprep.subr.mxu0 0.0
    %1652 = vmatpush1.xpose.msra.mxu0 0.0
    %1653 = vmatprep.subr.mxu0 0.0
    %1654 = vmatpush1.xpose.msra.mxu0 0.0
    %1655 = vmatprep.subr.mxu0 0.0
    %1656 = vmatpush1.xpose.msra.mxu0 0.0
    %1657 = vmatprep.subr.mxu0 0.0
    %1658 = vmatpush1.xpose.msra.mxu0 0.0
    %1659 = vmatprep.mubr.f32.mxu0 0.0
    %1660 = vmatmul.mubr.f32.gmra.mrb[0].mxu0 %v1561
    %v1661 = vpop.f32.mrb[0].mxu0
    %v1662 = vadd.f32 0.0, %v1661
    %v1663 = vpop.f32.mrb[0].mxu0
    %1664 = vdwg.mxu0
    %v1665 = vadd.f32 %v1556, %v1662
    %v1666 = vld [vmem:[%s2] sm:$0x1]
    %v1667 = vlaneseq
    %v1668 = vshrl.u32 %v1667, 7
    %v1669 = vadd.s32 %v1668, 8
    %v1670 = vadd.s32 %v1668, 16
    %v1671 = vadd.s32 %v1668, 24
    %v1672 = vlaneseq
    %v1673 = vshrl.u32 %v1672, 7
    %v1674 = vsub.s32 0, %v1673
    %v1675 = vrot.slane %v1666, %v1674
    %vm1676 = vcmp.eq.s32.totalorder %v1668, %v1675
    %vm1677 = vcmp.eq.s32.totalorder %v1669, %v1675
    %vm1678 = vcmp.eq.s32.totalorder %v1670, %v1675
    %vm1679 = vcmp.eq.s32.totalorder %v1671, %v1675
    %v1680 = vsel %vm1676, 1, 0
    %v1681 = vsel %vm1677, 1, 0
    %v1682 = vsel %vm1678, 1, 0
    %v1683 = vsel %vm1679, 1, 0
    %v1684 = vcvt.s32.f32 %v1680
    %v1685 = vcvt.s32.f32 %v1681
    %v1686 = vcvt.s32.f32 %v1682
    %v1687 = vcvt.s32.f32 %v1683
    %s1688 = sld [smem:[#allocation2]]
    %v1689 = vstv %s1688
    %1690 = vmatprep.subr.mxu0 0.0
    %1691 = vmatpush1.xpose.msra.mxu0 %v1684
    %1692 = vmatprep.subr.mxu0 0.0
    %1693 = vmatpush1.xpose.msra.mxu0 %v1685
    %1694 = vmatprep.subr.mxu0 0.0
    %1695 = vmatpush1.xpose.msra.mxu0 %v1686
    %1696 = vmatprep.subr.mxu0 0.0
    %1697 = vmatpush1.xpose.msra.mxu0 %v1687
    %1698 = vmatprep.subr.mxu0 0.0
    %1699 = vmatpush1.xpose.msra.mxu0 0.0
    %1700 = vmatprep.subr.mxu0 0.0
    %1701 = vmatpush1.xpose.msra.mxu0 0.0
    %1702 = vmatprep.subr.mxu0 0.0
    %1703 = vmatpush1.xpose.msra.mxu0 0.0
    %1704 = vmatprep.subr.mxu0 0.0
    %1705 = vmatpush1.xpose.msra.mxu0 0.0
    %1706 = vmatprep.subr.mxu0 0.0
    %1707 = vmatpush1.xpose.msra.mxu0 0.0
    %1708 = vmatprep.subr.mxu0 0.0
    %1709 = vmatpush1.xpose.msra.mxu0 0.0
    %1710 = vmatprep.subr.mxu0 0.0
    %1711 = vmatpush1.xpose.msra.mxu0 0.0
    %1712 = vmatprep.subr.mxu0 0.0
    %1713 = vmatpush1.xpose.msra.mxu0 0.0
    %1714 = vmatprep.subr.mxu0 0.0
    %1715 = vmatpush1.xpose.msra.mxu0 0.0
    %1716 = vmatprep.subr.mxu0 0.0
    %1717 = vmatpush1.xpose.msra.mxu0 0.0
    %1718 = vmatprep.subr.mxu0 0.0
    %1719 = vmatpush1.xpose.msra.mxu0 0.0
    %1720 = vmatprep.subr.mxu0 0.0
    %1721 = vmatpush1.xpose.msra.mxu0 0.0
    %1722 = vmatprep.subr.mxu0 0.0
    %1723 = vmatpush1.xpose.msra.mxu0 0.0
    %1724 = vmatprep.subr.mxu0 0.0
    %1725 = vmatpush1.xpose.msra.mxu0 0.0
    %1726 = vmatprep.subr.mxu0 0.0
    %1727 = vmatpush1.xpose.msra.mxu0 0.0
    %1728 = vmatprep.subr.mxu0 0.0
    %1729 = vmatpush1.xpose.msra.mxu0 0.0
    %1730 = vmatprep.subr.mxu0 0.0
    %1731 = vmatpush1.xpose.msra.mxu0 0.0
    %1732 = vmatprep.subr.mxu0 0.0
    %1733 = vmatpush1.xpose.msra.mxu0 0.0
    %1734 = vmatprep.subr.mxu0 0.0
    %1735 = vmatpush1.xpose.msra.mxu0 0.0
    %1736 = vmatprep.subr.mxu0 0.0
    %1737 = vmatpush1.xpose.msra.mxu0 0.0
    %1738 = vmatprep.subr.mxu0 0.0
    %1739 = vmatpush1.xpose.msra.mxu0 0.0
    %1740 = vmatprep.subr.mxu0 0.0
    %1741 = vmatpush1.xpose.msra.mxu0 0.0
    %1742 = vmatprep.subr.mxu0 0.0
    %1743 = vmatpush1.xpose.msra.mxu0 0.0
    %1744 = vmatprep.subr.mxu0 0.0
    %1745 = vmatpush1.xpose.msra.mxu0 0.0
    %1746 = vmatprep.subr.mxu0 0.0
    %1747 = vmatpush1.xpose.msra.mxu0 0.0
    %1748 = vmatprep.subr.mxu0 0.0
    %1749 = vmatpush1.xpose.msra.mxu0 0.0
    %1750 = vmatprep.subr.mxu0 0.0
    %1751 = vmatpush1.xpose.msra.mxu0 0.0
    %1752 = vmatprep.subr.mxu0 0.0
    %1753 = vmatpush1.xpose.msra.mxu0 0.0
    %1754 = vmatprep.mubr.f32.mxu0 0.0
    %1755 = vmatmul.mubr.f32.gmra.mrb[0].mxu0 %v1665
    %v1756 = vpop.f32.mrb[0].mxu0
    %v1757 = vadd.f32 %v1689, %v1756
    %v1758 = vpop.f32.mrb[0].mxu0
    %1759 = vdwg.mxu0
    %v1760 = vmax.f32 %v1757, 0.0
    %vm1761 = vcmask 253952
    %1762 = vst.msk [vmem:[%s13] sm:$0x1] %vm1761, %v1760
    // Predicated region
    $region54: #{gnn_skip_small_forward_batched.1} parent=1 // pred_check
      _
    $region55: #{gnn_skip_small_forward_batched.1} parent=1 // pred_check_branch
      %1764 = sbr.rel (0) target = $region57
    $region56: #{gnn_skip_small_forward_batched.1} parent=1 // pred_region
      _
    $region57: #{gnn_skip_small_forward_batched.1} parent=1 // pred_fallthru
      _
    // Predicated region
    $region58: #{gnn_skip_small_forward_batched.1} parent=1 // pred_check
      _
    $region59: #{gnn_skip_small_forward_batched.1} parent=1 // pred_check_branch
      %1766 = sbr.rel (0) target = $region61
    $region60: #{gnn_skip_small_forward_batched.1} parent=1 // pred_region
      %s1768 = ssub.s32 2048, 2048
      %1769 = vsyncadd [#allocation4], %s1768
      %s1770 = sshll.u32 [#allocation3], 4
      %s1771 = int_to_ptr.vmem [resolvable:$true] %s1770
      %1776 = dma.vmem_to_hbm [thread:$0]  %s1771, 2048, %s14, [#allocation4], 128, 128, 8
    $region61: #{gnn_skip_small_forward_batched.1} parent=1 // pred_fallthru
      _
    // Predicated region
    $region62: #{gnn_skip_small_forward_batched.1} parent=1 // pred_check
      _
    $region63: #{gnn_skip_small_forward_batched.1} parent=1 // pred_check_branch
      %1778 = sbr.rel (0) target = $region65
    $region64: #{gnn_skip_small_forward_batched.1} parent=1 // pred_region
      _
    $region65: #{gnn_skip_small_forward_batched.1} parent=1 // pred_fallthru
      _
    // Predicated region
    $region66: #{gnn_skip_small_forward_batched.1} parent=1 // pred_check
      _
    $region67: #{gnn_skip_small_forward_batched.1} parent=1 // pred_check_branch
      %1780 = sbr.rel (0) target = $region69
    $region68: #{gnn_skip_small_forward_batched.1} parent=1 // pred_region
      %1781 = dma.done [#allocation4], 2048
    $region69: #{gnn_skip_small_forward_batched.1} parent=1 // pred_fallthru
      _
    %1782 = vsyncpa [#allocation4], 1

</llo_original>
